<compile_context>
chip_gen: v7x
topology: tpu7x:2x2x1
jax: 0.10.0
libtpu: 0.0.40
codegen_flags: <defaults>
</compile_context>

<pallas_src>
from functools import partial

import jax
import jax.numpy as jnp
from jax.experimental import pallas as pl
from jax.experimental.pallas import tpu as pltpu


def _round_up(n, m):
    return (n + m - 1) // m * m


def ae_kernel(x_ref,                                    # (S*B_pad, I) time-major, zero-padded rows
              wih1T_ref, whh1T_ref, bgi1_ref, bhn1_ref,  # GRU1 (pre-transposed / bias-folded)
              wbig_ref, bbig_ref,                        # fused [GRU2 in-proj per step | Linear1]
              whh2T_ref, bhn2_ref,                       # GRU2 hidden projection
              wl2T_ref, bl2_ref,                         # Linear2
              out_ref,                                   # (B_pad, num_hour + hat_size)
              *, S, H, tpad, hat_size):
    f32 = jnp.float32
    Bp = out_ref.shape[0]
    H2, H3 = 2 * H, 3 * H

    def run_gru(gi_steps, whhT_ref, bhn_ref):
        # gi_steps: list of S (B_pad, 3H) pre-computed input projections (bias-folded).
        whhT = whhT_ref[...]                                    # (H, 3H)
        bhn = jnp.broadcast_to(bhn_ref[...], (Bp, H))           # hoisted broadcast
        h = jnp.zeros((Bp, H), f32)
        for gi in gi_steps:                                     # S = 8 -> fully unrolled
            # Only MXU op on the serial chain: hidden-state projection.
            gh = jnp.dot(h, whhT, preferred_element_type=f32)   # (B_pad, 3H)
            # Fused r/z pre-activation: one add + one sigmoid for both gates.
            rz = jax.nn.sigmoid(gi[:, :H2] + gh[:, :H2])
            r = rz[:, :H]
            z = rz[:, H:]
            n = jnp.tanh(gi[:, H2:H3] + r * (gh[:, H2:H3] + bhn))
            h = (1.0 - z) * n + z * h
        return h

    # ---- GRU layer 1: hoisted input projection for ALL timesteps (one matmul).
    gi1 = jnp.dot(x_ref[...], wih1T_ref[...],
                  preferred_element_type=f32) + bgi1_ref[...]          # (S*B_pad, 3H)
    # B_pad is a multiple of 8 -> each step slice is sublane-tile aligned.
    gi1_steps = [gi1[t * Bp:(t + 1) * Bp, :] for t in range(S)]
    h1 = run_gru(gi1_steps, whh1T_ref, bhn1_ref)

    # ---- ONE fused matmul on h1: per-step GRU2 input projections (each padded
    #      to a 128-lane block) followed by the Linear1 output at a 128-aligned
    #      offset.  gi2(t) = h1 @ (wl1T_t @ wih2T) + (bl1_t @ wih2T + bgi2).
    big = jnp.dot(h1, wbig_ref[...],
                  preferred_element_type=f32) + bbig_ref[...]          # (B_pad, S*TPAD + hat)
    gi2_steps = [big[:, t * tpad:t * tpad + H3] for t in range(S)]     # 128-aligned starts
    xhat = big[:, S * tpad:S * tpad + hat_size]                        # Linear1 output
    h2 = run_gru(gi2_steps, whh2T_ref, bhn2_ref)

    # ---- Linear2 on the last decoder hidden state; single merged store.
    lin2 = jnp.dot(h2, wl2T_ref[...], preferred_element_type=f32) + bl2_ref[...]
    out_ref[...] = jnp.concatenate([lin2, xhat], axis=1).astype(out_ref.dtype)


def _prep_gru(wih, whh, bih, bhh):
    """Pre-transpose weights and fold biases (PyTorch gate order [r, z, n]).

    bgi = b_ih + [b_hr, b_hz, 0]  (added once to the hoisted input projection)
    bhn = b_hn                     (must stay inside r * (Whn h + b_hn))
    """
    H = whh.shape[1]
    bgi = bih + jnp.concatenate(
        [bhh[:, :2 * H], jnp.zeros_like(bhh[:, 2 * H:])], axis=1)
    bhn = bhh[:, 2 * H:]
    return wih.T, whh.T, bgi, bhn


def prepare_params(params, hat_size, num_hour):
    """One-time weight preparation (call at init, NOT per forward)."""
    I = params["wih1"].shape[1]
    H = params["whh1"].shape[1]
    H3 = 3 * H
    TPAD = _round_up(H3, 128)
    S = num_hour // I
    I2 = hat_size // S

    wih1T, whh1T, bgi1, bhn1 = _prep_gru(params["wih1"], params["whh1"],
                                         params["bih1"], params["bhh1"])
    wih2T, whh2T, bgi2, bhn2 = _prep_gru(params["wih2"], params["whh2"],
                                         params["bih2"], params["bhh2"])

    wl1T = params["wl1"].T      # (H, hat_size)
    bl1 = params["bl1"]         # (1, hat_size)
    wl2T = params["wl2"].T      # (H, num_hour)
    bl2 = params["bl2"]         # (1, num_hour)

    # Fused weight: S blocks of (wl1T_t @ wih2T) each lane-padded to TPAD,
    # then the raw Linear1 weight at the 128-aligned offset S*TPAD.
    w_blocks, b_blocks = [], []
    for t in range(S):
        wt = wl1T[:, t * I2:(t + 1) * I2] @ wih2T               # (H, 3H)
        bt = bl1[:, t * I2:(t + 1) * I2] @ wih2T + bgi2         # (1, 3H)
        w_blocks.append(jnp.pad(wt, ((0, 0), (0, TPAD - H3))))
        b_blocks.append(jnp.pad(bt, ((0, 0), (0, TPAD - H3))))
    w_blocks.append(wl1T)
    b_blocks.append(bl1)
    wbig = jnp.concatenate(w_blocks, axis=1)                    # (H, S*TPAD + hat_size)
    bbig = jnp.concatenate(b_blocks, axis=1)                    # (1, S*TPAD + hat_size)

    return {
        "wih1T": wih1T, "whh1T": whh1T, "bgi1": bgi1, "bhn1": bhn1,
        "wbig": wbig, "bbig": bbig,
        "whh2T": whh2T, "bhn2": bhn2,
        "wl2T": wl2T, "bl2": bl2,
    }


@partial(jax.jit, static_argnames=("hat_size", "num_hour"))
def ae_forward(x, prepped, hat_size, num_hour):
    B, S, I = x.shape
    H = prepped["whh1T"].shape[0]
    H3 = 3 * H
    TPAD = _round_up(H3, 128)
    I2 = hat_size // S
    OI = num_hour // S
    B_pad = max(8, _round_up(B, 8))     # sublane-aligned batch

    # Time-major, batch-padded input slab: GRU1 input projection becomes one
    # matmul and step t occupies the full sublane-aligned rows [t*B_pad, (t+1)*B_pad).
    x_tm = jnp.transpose(x, (1, 0, 2))                          # (S, B, I)
    if B_pad != B:
        x_tm = jnp.pad(x_tm, ((0, 0), (0, B_pad - B), (0, 0)))
    x_tm = x_tm.reshape(S * B_pad, I)

    args = (x_tm,
            prepped["wih1T"], prepped["whh1T"], prepped["bgi1"], prepped["bhn1"],
            prepped["wbig"], prepped["bbig"],
            prepped["whh2T"], prepped["bhn2"],
            prepped["wl2T"], prepped["bl2"])

    # Explicit scoped-VMEM limit: resident args + outputs + the two value slabs,
    # with 2x headroom, capped below v7x's 64 MiB physical VMEM.
    NBIG = prepped["wbig"].shape[1]
    est = sum(int(a.size) * a.dtype.itemsize for a in args)
    est += B_pad * (num_hour + hat_size) * 4
    est += S * B_pad * H3 * 4 + B_pad * NBIG * 4
    vmem_limit = int(min(48 << 20, max(4 << 20, 2 * est)))

    vmem = pl.BlockSpec(memory_space=pltpu.MemorySpace.VMEM)
    kernel = partial(ae_kernel, S=S, H=H, tpad=TPAD, hat_size=hat_size)

    slab = pl.pallas_call(
        kernel,
        out_shape=jax.ShapeDtypeStruct((B_pad, num_hour + hat_size), jnp.float32),
        in_specs=[vmem] * len(args),
        out_specs=vmem,
        compiler_params=pltpu.CompilerParams(vmem_limit_bytes=vmem_limit),
    )(*args)

    out2d = slab[:B, :num_hour]
    xhat2d = slab[:B, num_hour:num_hour + hat_size]
    return out2d.reshape(B, S, OI), xhat2d.reshape(B, S, I2)


def init_params(key, input_size, hidden_size, hat_size, num_hour):
    """Deterministic init mirroring the module's parameter shapes."""
    in2 = int(hat_size / (num_hour / input_size))  # GRU2 input size
    k = 1.0 / jnp.sqrt(hidden_size)
    ks = jax.random.split(key, 12)
    u = lambda kk, shape: jax.random.uniform(kk, shape, jnp.float32, -k, k)
    return {
        "wih1": u(ks[0], (3 * hidden_size, input_size)),
        "whh1": u(ks[1], (3 * hidden_size, hidden_size)),
        "bih1": u(ks[2], (1, 3 * hidden_size)),
        "bhh1": u(ks[3], (1, 3 * hidden_size)),
        "wl1":  u(ks[4], (hat_size, hidden_size)),
        "bl1":  u(ks[5], (1, hat_size)),
        "wih2": u(ks[6], (3 * hidden_size, in2)),
        "whh2": u(ks[7], (3 * hidden_size, hidden_size)),
        "bih2": u(ks[8], (1, 3 * hidden_size)),
        "bhh2": u(ks[9], (1, 3 * hidden_size)),
        "wl2":  u(ks[10], (num_hour, hidden_size)),
        "bl2":  u(ks[11], (1, num_hour)),
    }


def ae_reference(x, params, hat_size, num_hour):
    """Pure-JAX reference of the PyTorch forward (for correctness check)."""
    B, S, I = x.shape
    H = params["whh1"].shape[1]

    def gru_run(xs, wih, whh, bih, bhh):
        h = jnp.zeros((B, H), jnp.float32)
        for t in range(xs.shape[1]):
            gi = xs[:, t, :] @ wih.T + bih
            gh = h @ whh.T + bhh
            r = jax.nn.sigmoid(gi[:, :H] + gh[:, :H])
            z = jax.nn.sigmoid(gi[:, H:2 * H] + gh[:, H:2 * H])
            n = jnp.tanh(gi[:, 2 * H:] + r * gh[:, 2 * H:])
            h = (1.0 - z) * n + z * h
        return h

    h1 = gru_run(x, params["wih1"], params["whh1"], params["bih1"], params["bhh1"])
    lin1 = h1 @ params["wl1"].T + params["bl1"]
    x_hat = lin1.reshape(B, S, -1)
    h2 = gru_run(x_hat, params["wih2"], params["whh2"], params["bih2"], params["bhh2"])
    lin2 = h2 @ params["wl2"].T + params["bl2"]
    out = lin2.reshape(B, S, -1)
    return out, x_hat


if __name__ == "__main__":
    # Shapes consistent with the module: S = num_hour / input_size,
    # hat_size divisible by S.
    input_size, hidden_size, hat_size, num_hour = 4, 32, 16, 32
    S = num_hour // input_size   # 8
    B = 2

    key = jax.random.PRNGKey(0)
    kx, kp = jax.random.split(key)
    x = jax.random.normal(kx, (B, S, input_size), jnp.float32)
    params = init_params(kp, input_size, hidden_size, hat_size, num_hour)

    # One-time weight prep (hoisted out of the per-call path).
    prepped = jax.tree_util.tree_map(jax.block_until_ready,
                                     prepare_params(params, hat_size, num_hour))

    out, x_hat = ae_forward(x, prepped, hat_size, num_hour)
    out = jax.block_until_ready(out)
    x_hat = jax.block_until_ready(x_hat)

    ref_out, ref_xhat = ae_reference(x, params, hat_size, num_hour)
    assert out.shape == (B, S, num_hour // S)
    assert x_hat.shape == (B, S, hat_size // S)
    assert jnp.allclose(out, ref_out, rtol=1e-4, atol=1e-4)
    assert jnp.allclose(x_hat, ref_xhat, rtol=1e-4, atol=1e-4)

    print("KERNEL_OK")
</pallas_src>

<mosaic_0001>
module attributes {stable_mosaic.version = 11 : i64} {
  func.func @ae_kernel(%arg0: memref<64x4xf32, #tpu.memory_space<vmem>>, %arg1: memref<4x96xf32, #tpu.memory_space<vmem>>, %arg2: memref<32x96xf32, #tpu.memory_space<vmem>>, %arg3: memref<1x96xf32, #tpu.memory_space<vmem>>, %arg4: memref<1x32xf32, #tpu.memory_space<vmem>>, %arg5: memref<32x1040xf32, #tpu.memory_space<vmem>>, %arg6: memref<1x1040xf32, #tpu.memory_space<vmem>>, %arg7: memref<32x96xf32, #tpu.memory_space<vmem>>, %arg8: memref<1x32xf32, #tpu.memory_space<vmem>>, %arg9: memref<32x32xf32, #tpu.memory_space<vmem>>, %arg10: memref<1x32xf32, #tpu.memory_space<vmem>>, %arg11: memref<8x48xf32, #tpu.memory_space<vmem>>) attributes {dimension_semantics = [], scalar_prefetch = 0 : i64, scratch_operands = 0 : i64, tpu.core_type = #tpu.core_type<tc>} {
    %c0 = arith.constant 0 : index
    %c0_0 = arith.constant 0 : index
    %0 = vector.load %arg0[%c0, %c0_0] : memref<64x4xf32, #tpu.memory_space<vmem>>, vector<64x4xf32>
    %c0_1 = arith.constant 0 : index
    %c0_2 = arith.constant 0 : index
    %1 = vector.load %arg1[%c0_1, %c0_2] : memref<4x96xf32, #tpu.memory_space<vmem>>, vector<4x96xf32>
    %cst = arith.constant dense<0.000000e+00> : vector<64x96xf32>
    %2 = tpu.matmul %0, %1, %cst {dimension_numbers = #tpu.dot_dimension_numbers<[1], [0], [0], [1], [0, 0, 1, 1], [], []>} : vector<64x4xf32>, vector<4x96xf32>, vector<64x96xf32> -> vector<64x96xf32>
    %c0_3 = arith.constant 0 : index
    %c0_4 = arith.constant 0 : index
    %3 = vector.load %arg3[%c0_3, %c0_4] : memref<1x96xf32, #tpu.memory_space<vmem>>, vector<1x96xf32>
    %4 = vector.broadcast %3 : vector<1x96xf32> to vector<64x96xf32>
    %5 = arith.addf %2, %4 : vector<64x96xf32>
    %6 = vector.extract_strided_slice %5 {offsets = [0, 0], sizes = [8, 96], strides = [1, 1]} : vector<64x96xf32> to vector<8x96xf32>
    %7 = vector.extract_strided_slice %5 {offsets = [8, 0], sizes = [8, 96], strides = [1, 1]} : vector<64x96xf32> to vector<8x96xf32>
    %8 = vector.extract_strided_slice %5 {offsets = [16, 0], sizes = [8, 96], strides = [1, 1]} : vector<64x96xf32> to vector<8x96xf32>
    %9 = vector.extract_strided_slice %5 {offsets = [24, 0], sizes = [8, 96], strides = [1, 1]} : vector<64x96xf32> to vector<8x96xf32>
    %10 = vector.extract_strided_slice %5 {offsets = [32, 0], sizes = [8, 96], strides = [1, 1]} : vector<64x96xf32> to vector<8x96xf32>
    %11 = vector.extract_strided_slice %5 {offsets = [40, 0], sizes = [8, 96], strides = [1, 1]} : vector<64x96xf32> to vector<8x96xf32>
    %12 = vector.extract_strided_slice %5 {offsets = [48, 0], sizes = [8, 96], strides = [1, 1]} : vector<64x96xf32> to vector<8x96xf32>
    %13 = vector.extract_strided_slice %5 {offsets = [56, 0], sizes = [8, 96], strides = [1, 1]} : vector<64x96xf32> to vector<8x96xf32>
    %c0_5 = arith.constant 0 : index
    %c0_6 = arith.constant 0 : index
    %14 = vector.load %arg2[%c0_5, %c0_6] : memref<32x96xf32, #tpu.memory_space<vmem>>, vector<32x96xf32>
    %c0_7 = arith.constant 0 : index
    %c0_8 = arith.constant 0 : index
    %15 = vector.load %arg4[%c0_7, %c0_8] : memref<1x32xf32, #tpu.memory_space<vmem>>, vector<1x32xf32>
    %16 = vector.shape_cast %15 : vector<1x32xf32> to vector<1x32xf32>
    %17 = vector.broadcast %16 : vector<1x32xf32> to vector<8x32xf32>
    %cst_9 = arith.constant 0.000000e+00 : f32
    %18 = vector.broadcast %cst_9 : f32 to vector<8x32xf32>
    %cst_10 = arith.constant dense<0.000000e+00> : vector<8x96xf32>
    %19 = tpu.matmul %18, %14, %cst_10 {dimension_numbers = #tpu.dot_dimension_numbers<[1], [0], [0], [1], [0, 0, 1, 1], [], []>} : vector<8x32xf32>, vector<32x96xf32>, vector<8x96xf32> -> vector<8x96xf32>
    %20 = vector.extract_strided_slice %6 {offsets = [0, 0], sizes = [8, 64], strides = [1, 1]} : vector<8x96xf32> to vector<8x64xf32>
    %21 = vector.extract_strided_slice %19 {offsets = [0, 0], sizes = [8, 64], strides = [1, 1]} : vector<8x96xf32> to vector<8x64xf32>
    %22 = arith.addf %20, %21 : vector<8x64xf32>
    %23 = arith.negf %22 : vector<8x64xf32>
    %24 = math.exp %23 : vector<8x64xf32>
    %cst_11 = arith.constant 1.000000e+00 : f32
    %25 = vector.broadcast %cst_11 : f32 to vector<8x64xf32>
    %26 = arith.addf %25, %24 : vector<8x64xf32>
    %27 = arith.divf %25, %26 : vector<8x64xf32>
    %28 = vector.extract_strided_slice %27 {offsets = [0, 0], sizes = [8, 32], strides = [1, 1]} : vector<8x64xf32> to vector<8x32xf32>
    %29 = vector.extract_strided_slice %27 {offsets = [0, 32], sizes = [8, 32], strides = [1, 1]} : vector<8x64xf32> to vector<8x32xf32>
    %30 = vector.extract_strided_slice %6 {offsets = [0, 64], sizes = [8, 32], strides = [1, 1]} : vector<8x96xf32> to vector<8x32xf32>
    %31 = vector.extract_strided_slice %19 {offsets = [0, 64], sizes = [8, 32], strides = [1, 1]} : vector<8x96xf32> to vector<8x32xf32>
    %32 = arith.addf %31, %17 : vector<8x32xf32>
    %33 = arith.mulf %28, %32 : vector<8x32xf32>
    %34 = arith.addf %30, %33 : vector<8x32xf32>
    %35 = math.tanh %34 : vector<8x32xf32>
    %cst_12 = arith.constant 1.000000e+00 : f32
    %36 = vector.broadcast %cst_12 : f32 to vector<8x32xf32>
    %37 = arith.subf %36, %29 : vector<8x32xf32>
    %38 = arith.mulf %37, %35 : vector<8x32xf32>
    %39 = arith.mulf %29, %18 : vector<8x32xf32>
    %40 = arith.addf %38, %39 : vector<8x32xf32>
    %cst_13 = arith.constant dense<0.000000e+00> : vector<8x96xf32>
    %41 = tpu.matmul %40, %14, %cst_13 {dimension_numbers = #tpu.dot_dimension_numbers<[1], [0], [0], [1], [0, 0, 1, 1], [], []>} : vector<8x32xf32>, vector<32x96xf32>, vector<8x96xf32> -> vector<8x96xf32>
    %42 = vector.extract_strided_slice %7 {offsets = [0, 0], sizes = [8, 64], strides = [1, 1]} : vector<8x96xf32> to vector<8x64xf32>
    %43 = vector.extract_strided_slice %41 {offsets = [0, 0], sizes = [8, 64], strides = [1, 1]} : vector<8x96xf32> to vector<8x64xf32>
    %44 = arith.addf %42, %43 : vector<8x64xf32>
    %45 = arith.negf %44 : vector<8x64xf32>
    %46 = math.exp %45 : vector<8x64xf32>
    %cst_14 = arith.constant 1.000000e+00 : f32
    %47 = vector.broadcast %cst_14 : f32 to vector<8x64xf32>
    %48 = arith.addf %47, %46 : vector<8x64xf32>
    %49 = arith.divf %47, %48 : vector<8x64xf32>
    %50 = vector.extract_strided_slice %49 {offsets = [0, 0], sizes = [8, 32], strides = [1, 1]} : vector<8x64xf32> to vector<8x32xf32>
    %51 = vector.extract_strided_slice %49 {offsets = [0, 32], sizes = [8, 32], strides = [1, 1]} : vector<8x64xf32> to vector<8x32xf32>
    %52 = vector.extract_strided_slice %7 {offsets = [0, 64], sizes = [8, 32], strides = [1, 1]} : vector<8x96xf32> to vector<8x32xf32>
    %53 = vector.extract_strided_slice %41 {offsets = [0, 64], sizes = [8, 32], strides = [1, 1]} : vector<8x96xf32> to vector<8x32xf32>
    %54 = arith.addf %53, %17 : vector<8x32xf32>
    %55 = arith.mulf %50, %54 : vector<8x32xf32>
    %56 = arith.addf %52, %55 : vector<8x32xf32>
    %57 = math.tanh %56 : vector<8x32xf32>
    %cst_15 = arith.constant 1.000000e+00 : f32
    %58 = vector.broadcast %cst_15 : f32 to vector<8x32xf32>
    %59 = arith.subf %58, %51 : vector<8x32xf32>
    %60 = arith.mulf %59, %57 : vector<8x32xf32>
    %61 = arith.mulf %51, %40 : vector<8x32xf32>
    %62 = arith.addf %60, %61 : vector<8x32xf32>
    %cst_16 = arith.constant dense<0.000000e+00> : vector<8x96xf32>
    %63 = tpu.matmul %62, %14, %cst_16 {dimension_numbers = #tpu.dot_dimension_numbers<[1], [0], [0], [1], [0, 0, 1, 1], [], []>} : vector<8x32xf32>, vector<32x96xf32>, vector<8x96xf32> -> vector<8x96xf32>
    %64 = vector.extract_strided_slice %8 {offsets = [0, 0], sizes = [8, 64], strides = [1, 1]} : vector<8x96xf32> to vector<8x64xf32>
    %65 = vector.extract_strided_slice %63 {offsets = [0, 0], sizes = [8, 64], strides = [1, 1]} : vector<8x96xf32> to vector<8x64xf32>
    %66 = arith.addf %64, %65 : vector<8x64xf32>
    %67 = arith.negf %66 : vector<8x64xf32>
    %68 = math.exp %67 : vector<8x64xf32>
    %cst_17 = arith.constant 1.000000e+00 : f32
    %69 = vector.broadcast %cst_17 : f32 to vector<8x64xf32>
    %70 = arith.addf %69, %68 : vector<8x64xf32>
    %71 = arith.divf %69, %70 : vector<8x64xf32>
    %72 = vector.extract_strided_slice %71 {offsets = [0, 0], sizes = [8, 32], strides = [1, 1]} : vector<8x64xf32> to vector<8x32xf32>
    %73 = vector.extract_strided_slice %71 {offsets = [0, 32], sizes = [8, 32], strides = [1, 1]} : vector<8x64xf32> to vector<8x32xf32>
    %74 = vector.extract_strided_slice %8 {offsets = [0, 64], sizes = [8, 32], strides = [1, 1]} : vector<8x96xf32> to vector<8x32xf32>
    %75 = vector.extract_strided_slice %63 {offsets = [0, 64], sizes = [8, 32], strides = [1, 1]} : vector<8x96xf32> to vector<8x32xf32>
    %76 = arith.addf %75, %17 : vector<8x32xf32>
    %77 = arith.mulf %72, %76 : vector<8x32xf32>
    %78 = arith.addf %74, %77 : vector<8x32xf32>
    %79 = math.tanh %78 : vector<8x32xf32>
    %cst_18 = arith.constant 1.000000e+00 : f32
    %80 = vector.broadcast %cst_18 : f32 to vector<8x32xf32>
    %81 = arith.subf %80, %73 : vector<8x32xf32>
    %82 = arith.mulf %81, %79 : vector<8x32xf32>
    %83 = arith.mulf %73, %62 : vector<8x32xf32>
    %84 = arith.addf %82, %83 : vector<8x32xf32>
    %cst_19 = arith.constant dense<0.000000e+00> : vector<8x96xf32>
    %85 = tpu.matmul %84, %14, %cst_19 {dimension_numbers = #tpu.dot_dimension_numbers<[1], [0], [0], [1], [0, 0, 1, 1], [], []>} : vector<8x32xf32>, vector<32x96xf32>, vector<8x96xf32> -> vector<8x96xf32>
    %86 = vector.extract_strided_slice %9 {offsets = [0, 0], sizes = [8, 64], strides = [1, 1]} : vector<8x96xf32> to vector<8x64xf32>
    %87 = vector.extract_strided_slice %85 {offsets = [0, 0], sizes = [8, 64], strides = [1, 1]} : vector<8x96xf32> to vector<8x64xf32>
    %88 = arith.addf %86, %87 : vector<8x64xf32>
    %89 = arith.negf %88 : vector<8x64xf32>
    %90 = math.exp %89 : vector<8x64xf32>
    %cst_20 = arith.constant 1.000000e+00 : f32
    %91 = vector.broadcast %cst_20 : f32 to vector<8x64xf32>
    %92 = arith.addf %91, %90 : vector<8x64xf32>
    %93 = arith.divf %91, %92 : vector<8x64xf32>
    %94 = vector.extract_strided_slice %93 {offsets = [0, 0], sizes = [8, 32], strides = [1, 1]} : vector<8x64xf32> to vector<8x32xf32>
    %95 = vector.extract_strided_slice %93 {offsets = [0, 32], sizes = [8, 32], strides = [1, 1]} : vector<8x64xf32> to vector<8x32xf32>
    %96 = vector.extract_strided_slice %9 {offsets = [0, 64], sizes = [8, 32], strides = [1, 1]} : vector<8x96xf32> to vector<8x32xf32>
    %97 = vector.extract_strided_slice %85 {offsets = [0, 64], sizes = [8, 32], strides = [1, 1]} : vector<8x96xf32> to vector<8x32xf32>
    %98 = arith.addf %97, %17 : vector<8x32xf32>
    %99 = arith.mulf %94, %98 : vector<8x32xf32>
    %100 = arith.addf %96, %99 : vector<8x32xf32>
    %101 = math.tanh %100 : vector<8x32xf32>
    %cst_21 = arith.constant 1.000000e+00 : f32
    %102 = vector.broadcast %cst_21 : f32 to vector<8x32xf32>
    %103 = arith.subf %102, %95 : vector<8x32xf32>
    %104 = arith.mulf %103, %101 : vector<8x32xf32>
    %105 = arith.mulf %95, %84 : vector<8x32xf32>
    %106 = arith.addf %104, %105 : vector<8x32xf32>
    %cst_22 = arith.constant dense<0.000000e+00> : vector<8x96xf32>
    %107 = tpu.matmul %106, %14, %cst_22 {dimension_numbers = #tpu.dot_dimension_numbers<[1], [0], [0], [1], [0, 0, 1, 1], [], []>} : vector<8x32xf32>, vector<32x96xf32>, vector<8x96xf32> -> vector<8x96xf32>
    %108 = vector.extract_strided_slice %10 {offsets = [0, 0], sizes = [8, 64], strides = [1, 1]} : vector<8x96xf32> to vector<8x64xf32>
    %109 = vector.extract_strided_slice %107 {offsets = [0, 0], sizes = [8, 64], strides = [1, 1]} : vector<8x96xf32> to vector<8x64xf32>
    %110 = arith.addf %108, %109 : vector<8x64xf32>
    %111 = arith.negf %110 : vector<8x64xf32>
    %112 = math.exp %111 : vector<8x64xf32>
    %cst_23 = arith.constant 1.000000e+00 : f32
    %113 = vector.broadcast %cst_23 : f32 to vector<8x64xf32>
    %114 = arith.addf %113, %112 : vector<8x64xf32>
    %115 = arith.divf %113, %114 : vector<8x64xf32>
    %116 = vector.extract_strided_slice %115 {offsets = [0, 0], sizes = [8, 32], strides = [1, 1]} : vector<8x64xf32> to vector<8x32xf32>
    %117 = vector.extract_strided_slice %115 {offsets = [0, 32], sizes = [8, 32], strides = [1, 1]} : vector<8x64xf32> to vector<8x32xf32>
    %118 = vector.extract_strided_slice %10 {offsets = [0, 64], sizes = [8, 32], strides = [1, 1]} : vector<8x96xf32> to vector<8x32xf32>
    %119 = vector.extract_strided_slice %107 {offsets = [0, 64], sizes = [8, 32], strides = [1, 1]} : vector<8x96xf32> to vector<8x32xf32>
    %120 = arith.addf %119, %17 : vector<8x32xf32>
    %121 = arith.mulf %116, %120 : vector<8x32xf32>
    %122 = arith.addf %118, %121 : vector<8x32xf32>
    %123 = math.tanh %122 : vector<8x32xf32>
    %cst_24 = arith.constant 1.000000e+00 : f32
    %124 = vector.broadcast %cst_24 : f32 to vector<8x32xf32>
    %125 = arith.subf %124, %117 : vector<8x32xf32>
    %126 = arith.mulf %125, %123 : vector<8x32xf32>
    %127 = arith.mulf %117, %106 : vector<8x32xf32>
    %128 = arith.addf %126, %127 : vector<8x32xf32>
    %cst_25 = arith.constant dense<0.000000e+00> : vector<8x96xf32>
    %129 = tpu.matmul %128, %14, %cst_25 {dimension_numbers = #tpu.dot_dimension_numbers<[1], [0], [0], [1], [0, 0, 1, 1], [], []>} : vector<8x32xf32>, vector<32x96xf32>, vector<8x96xf32> -> vector<8x96xf32>
    %130 = vector.extract_strided_slice %11 {offsets = [0, 0], sizes = [8, 64], strides = [1, 1]} : vector<8x96xf32> to vector<8x64xf32>
    %131 = vector.extract_strided_slice %129 {offsets = [0, 0], sizes = [8, 64], strides = [1, 1]} : vector<8x96xf32> to vector<8x64xf32>
    %132 = arith.addf %130, %131 : vector<8x64xf32>
    %133 = arith.negf %132 : vector<8x64xf32>
    %134 = math.exp %133 : vector<8x64xf32>
    %cst_26 = arith.constant 1.000000e+00 : f32
    %135 = vector.broadcast %cst_26 : f32 to vector<8x64xf32>
    %136 = arith.addf %135, %134 : vector<8x64xf32>
    %137 = arith.divf %135, %136 : vector<8x64xf32>
    %138 = vector.extract_strided_slice %137 {offsets = [0, 0], sizes = [8, 32], strides = [1, 1]} : vector<8x64xf32> to vector<8x32xf32>
    %139 = vector.extract_strided_slice %137 {offsets = [0, 32], sizes = [8, 32], strides = [1, 1]} : vector<8x64xf32> to vector<8x32xf32>
    %140 = vector.extract_strided_slice %11 {offsets = [0, 64], sizes = [8, 32], strides = [1, 1]} : vector<8x96xf32> to vector<8x32xf32>
    %141 = vector.extract_strided_slice %129 {offsets = [0, 64], sizes = [8, 32], strides = [1, 1]} : vector<8x96xf32> to vector<8x32xf32>
    %142 = arith.addf %141, %17 : vector<8x32xf32>
    %143 = arith.mulf %138, %142 : vector<8x32xf32>
    %144 = arith.addf %140, %143 : vector<8x32xf32>
    %145 = math.tanh %144 : vector<8x32xf32>
    %cst_27 = arith.constant 1.000000e+00 : f32
    %146 = vector.broadcast %cst_27 : f32 to vector<8x32xf32>
    %147 = arith.subf %146, %139 : vector<8x32xf32>
    %148 = arith.mulf %147, %145 : vector<8x32xf32>
    %149 = arith.mulf %139, %128 : vector<8x32xf32>
    %150 = arith.addf %148, %149 : vector<8x32xf32>
    %cst_28 = arith.constant dense<0.000000e+00> : vector<8x96xf32>
    %151 = tpu.matmul %150, %14, %cst_28 {dimension_numbers = #tpu.dot_dimension_numbers<[1], [0], [0], [1], [0, 0, 1, 1], [], []>} : vector<8x32xf32>, vector<32x96xf32>, vector<8x96xf32> -> vector<8x96xf32>
    %152 = vector.extract_strided_slice %12 {offsets = [0, 0], sizes = [8, 64], strides = [1, 1]} : vector<8x96xf32> to vector<8x64xf32>
    %153 = vector.extract_strided_slice %151 {offsets = [0, 0], sizes = [8, 64], strides = [1, 1]} : vector<8x96xf32> to vector<8x64xf32>
    %154 = arith.addf %152, %153 : vector<8x64xf32>
    %155 = arith.negf %154 : vector<8x64xf32>
    %156 = math.exp %155 : vector<8x64xf32>
    %cst_29 = arith.constant 1.000000e+00 : f32
    %157 = vector.broadcast %cst_29 : f32 to vector<8x64xf32>
    %158 = arith.addf %157, %156 : vector<8x64xf32>
    %159 = arith.divf %157, %158 : vector<8x64xf32>
    %160 = vector.extract_strided_slice %159 {offsets = [0, 0], sizes = [8, 32], strides = [1, 1]} : vector<8x64xf32> to vector<8x32xf32>
    %161 = vector.extract_strided_slice %159 {offsets = [0, 32], sizes = [8, 32], strides = [1, 1]} : vector<8x64xf32> to vector<8x32xf32>
    %162 = vector.extract_strided_slice %12 {offsets = [0, 64], sizes = [8, 32], strides = [1, 1]} : vector<8x96xf32> to vector<8x32xf32>
    %163 = vector.extract_strided_slice %151 {offsets = [0, 64], sizes = [8, 32], strides = [1, 1]} : vector<8x96xf32> to vector<8x32xf32>
    %164 = arith.addf %163, %17 : vector<8x32xf32>
    %165 = arith.mulf %160, %164 : vector<8x32xf32>
    %166 = arith.addf %162, %165 : vector<8x32xf32>
    %167 = math.tanh %166 : vector<8x32xf32>
    %cst_30 = arith.constant 1.000000e+00 : f32
    %168 = vector.broadcast %cst_30 : f32 to vector<8x32xf32>
    %169 = arith.subf %168, %161 : vector<8x32xf32>
    %170 = arith.mulf %169, %167 : vector<8x32xf32>
    %171 = arith.mulf %161, %150 : vector<8x32xf32>
    %172 = arith.addf %170, %171 : vector<8x32xf32>
    %cst_31 = arith.constant dense<0.000000e+00> : vector<8x96xf32>
    %173 = tpu.matmul %172, %14, %cst_31 {dimension_numbers = #tpu.dot_dimension_numbers<[1], [0], [0], [1], [0, 0, 1, 1], [], []>} : vector<8x32xf32>, vector<32x96xf32>, vector<8x96xf32> -> vector<8x96xf32>
    %174 = vector.extract_strided_slice %13 {offsets = [0, 0], sizes = [8, 64], strides = [1, 1]} : vector<8x96xf32> to vector<8x64xf32>
    %175 = vector.extract_strided_slice %173 {offsets = [0, 0], sizes = [8, 64], strides = [1, 1]} : vector<8x96xf32> to vector<8x64xf32>
    %176 = arith.addf %174, %175 : vector<8x64xf32>
    %177 = arith.negf %176 : vector<8x64xf32>
    %178 = math.exp %177 : vector<8x64xf32>
    %cst_32 = arith.constant 1.000000e+00 : f32
    %179 = vector.broadcast %cst_32 : f32 to vector<8x64xf32>
    %180 = arith.addf %179, %178 : vector<8x64xf32>
    %181 = arith.divf %179, %180 : vector<8x64xf32>
    %182 = vector.extract_strided_slice %181 {offsets = [0, 0], sizes = [8, 32], strides = [1, 1]} : vector<8x64xf32> to vector<8x32xf32>
    %183 = vector.extract_strided_slice %181 {offsets = [0, 32], sizes = [8, 32], strides = [1, 1]} : vector<8x64xf32> to vector<8x32xf32>
    %184 = vector.extract_strided_slice %13 {offsets = [0, 64], sizes = [8, 32], strides = [1, 1]} : vector<8x96xf32> to vector<8x32xf32>
    %185 = vector.extract_strided_slice %173 {offsets = [0, 64], sizes = [8, 32], strides = [1, 1]} : vector<8x96xf32> to vector<8x32xf32>
    %186 = arith.addf %185, %17 : vector<8x32xf32>
    %187 = arith.mulf %182, %186 : vector<8x32xf32>
    %188 = arith.addf %184, %187 : vector<8x32xf32>
    %189 = math.tanh %188 : vector<8x32xf32>
    %cst_33 = arith.constant 1.000000e+00 : f32
    %190 = vector.broadcast %cst_33 : f32 to vector<8x32xf32>
    %191 = arith.subf %190, %183 : vector<8x32xf32>
    %192 = arith.mulf %191, %189 : vector<8x32xf32>
    %193 = arith.mulf %183, %172 : vector<8x32xf32>
    %194 = arith.addf %192, %193 : vector<8x32xf32>
    %c0_34 = arith.constant 0 : index
    %c0_35 = arith.constant 0 : index
    %195 = vector.load %arg5[%c0_34, %c0_35] : memref<32x1040xf32, #tpu.memory_space<vmem>>, vector<32x1040xf32>
    %cst_36 = arith.constant dense<0.000000e+00> : vector<8x1040xf32>
    %196 = tpu.matmul %194, %195, %cst_36 {dimension_numbers = #tpu.dot_dimension_numbers<[1], [0], [0], [1], [0, 0, 1, 1], [], []>} : vector<8x32xf32>, vector<32x1040xf32>, vector<8x1040xf32> -> vector<8x1040xf32>
    %c0_37 = arith.constant 0 : index
    %c0_38 = arith.constant 0 : index
    %197 = vector.load %arg6[%c0_37, %c0_38] : memref<1x1040xf32, #tpu.memory_space<vmem>>, vector<1x1040xf32>
    %198 = vector.broadcast %197 : vector<1x1040xf32> to vector<8x1040xf32>
    %199 = arith.addf %196, %198 : vector<8x1040xf32>
    %200 = vector.extract_strided_slice %199 {offsets = [0, 0], sizes = [8, 96], strides = [1, 1]} : vector<8x1040xf32> to vector<8x96xf32>
    %201 = vector.extract_strided_slice %199 {offsets = [0, 128], sizes = [8, 96], strides = [1, 1]} : vector<8x1040xf32> to vector<8x96xf32>
    %202 = vector.extract_strided_slice %199 {offsets = [0, 256], sizes = [8, 96], strides = [1, 1]} : vector<8x1040xf32> to vector<8x96xf32>
    %203 = vector.extract_strided_slice %199 {offsets = [0, 384], sizes = [8, 96], strides = [1, 1]} : vector<8x1040xf32> to vector<8x96xf32>
    %204 = vector.extract_strided_slice %199 {offsets = [0, 512], sizes = [8, 96], strides = [1, 1]} : vector<8x1040xf32> to vector<8x96xf32>
    %205 = vector.extract_strided_slice %199 {offsets = [0, 640], sizes = [8, 96], strides = [1, 1]} : vector<8x1040xf32> to vector<8x96xf32>
    %206 = vector.extract_strided_slice %199 {offsets = [0, 768], sizes = [8, 96], strides = [1, 1]} : vector<8x1040xf32> to vector<8x96xf32>
    %207 = vector.extract_strided_slice %199 {offsets = [0, 896], sizes = [8, 96], strides = [1, 1]} : vector<8x1040xf32> to vector<8x96xf32>
    %208 = vector.extract_strided_slice %199 {offsets = [0, 1024], sizes = [8, 16], strides = [1, 1]} : vector<8x1040xf32> to vector<8x16xf32>
    %c0_39 = arith.constant 0 : index
    %c0_40 = arith.constant 0 : index
    %209 = vector.load %arg7[%c0_39, %c0_40] : memref<32x96xf32, #tpu.memory_space<vmem>>, vector<32x96xf32>
    %c0_41 = arith.constant 0 : index
    %c0_42 = arith.constant 0 : index
    %210 = vector.load %arg8[%c0_41, %c0_42] : memref<1x32xf32, #tpu.memory_space<vmem>>, vector<1x32xf32>
    %211 = vector.shape_cast %210 : vector<1x32xf32> to vector<1x32xf32>
    %212 = vector.broadcast %211 : vector<1x32xf32> to vector<8x32xf32>
    %cst_43 = arith.constant 0.000000e+00 : f32
    %213 = vector.broadcast %cst_43 : f32 to vector<8x32xf32>
    %cst_44 = arith.constant dense<0.000000e+00> : vector<8x96xf32>
    %214 = tpu.matmul %213, %209, %cst_44 {dimension_numbers = #tpu.dot_dimension_numbers<[1], [0], [0], [1], [0, 0, 1, 1], [], []>} : vector<8x32xf32>, vector<32x96xf32>, vector<8x96xf32> -> vector<8x96xf32>
    %215 = vector.extract_strided_slice %200 {offsets = [0, 0], sizes = [8, 64], strides = [1, 1]} : vector<8x96xf32> to vector<8x64xf32>
    %216 = vector.extract_strided_slice %214 {offsets = [0, 0], sizes = [8, 64], strides = [1, 1]} : vector<8x96xf32> to vector<8x64xf32>
    %217 = arith.addf %215, %216 : vector<8x64xf32>
    %218 = arith.negf %217 : vector<8x64xf32>
    %219 = math.exp %218 : vector<8x64xf32>
    %cst_45 = arith.constant 1.000000e+00 : f32
    %220 = vector.broadcast %cst_45 : f32 to vector<8x64xf32>
    %221 = arith.addf %220, %219 : vector<8x64xf32>
    %222 = arith.divf %220, %221 : vector<8x64xf32>
    %223 = vector.extract_strided_slice %222 {offsets = [0, 0], sizes = [8, 32], strides = [1, 1]} : vector<8x64xf32> to vector<8x32xf32>
    %224 = vector.extract_strided_slice %222 {offsets = [0, 32], sizes = [8, 32], strides = [1, 1]} : vector<8x64xf32> to vector<8x32xf32>
    %225 = vector.extract_strided_slice %200 {offsets = [0, 64], sizes = [8, 32], strides = [1, 1]} : vector<8x96xf32> to vector<8x32xf32>
    %226 = vector.extract_strided_slice %214 {offsets = [0, 64], sizes = [8, 32], strides = [1, 1]} : vector<8x96xf32> to vector<8x32xf32>
    %227 = arith.addf %226, %212 : vector<8x32xf32>
    %228 = arith.mulf %223, %227 : vector<8x32xf32>
    %229 = arith.addf %225, %228 : vector<8x32xf32>
    %230 = math.tanh %229 : vector<8x32xf32>
    %cst_46 = arith.constant 1.000000e+00 : f32
    %231 = vector.broadcast %cst_46 : f32 to vector<8x32xf32>
    %232 = arith.subf %231, %224 : vector<8x32xf32>
    %233 = arith.mulf %232, %230 : vector<8x32xf32>
    %234 = arith.mulf %224, %213 : vector<8x32xf32>
    %235 = arith.addf %233, %234 : vector<8x32xf32>
    %cst_47 = arith.constant dense<0.000000e+00> : vector<8x96xf32>
    %236 = tpu.matmul %235, %209, %cst_47 {dimension_numbers = #tpu.dot_dimension_numbers<[1], [0], [0], [1], [0, 0, 1, 1], [], []>} : vector<8x32xf32>, vector<32x96xf32>, vector<8x96xf32> -> vector<8x96xf32>
    %237 = vector.extract_strided_slice %201 {offsets = [0, 0], sizes = [8, 64], strides = [1, 1]} : vector<8x96xf32> to vector<8x64xf32>
    %238 = vector.extract_strided_slice %236 {offsets = [0, 0], sizes = [8, 64], strides = [1, 1]} : vector<8x96xf32> to vector<8x64xf32>
    %239 = arith.addf %237, %238 : vector<8x64xf32>
    %240 = arith.negf %239 : vector<8x64xf32>
    %241 = math.exp %240 : vector<8x64xf32>
    %cst_48 = arith.constant 1.000000e+00 : f32
    %242 = vector.broadcast %cst_48 : f32 to vector<8x64xf32>
    %243 = arith.addf %242, %241 : vector<8x64xf32>
    %244 = arith.divf %242, %243 : vector<8x64xf32>
    %245 = vector.extract_strided_slice %244 {offsets = [0, 0], sizes = [8, 32], strides = [1, 1]} : vector<8x64xf32> to vector<8x32xf32>
    %246 = vector.extract_strided_slice %244 {offsets = [0, 32], sizes = [8, 32], strides = [1, 1]} : vector<8x64xf32> to vector<8x32xf32>
    %247 = vector.extract_strided_slice %201 {offsets = [0, 64], sizes = [8, 32], strides = [1, 1]} : vector<8x96xf32> to vector<8x32xf32>
    %248 = vector.extract_strided_slice %236 {offsets = [0, 64], sizes = [8, 32], strides = [1, 1]} : vector<8x96xf32> to vector<8x32xf32>
    %249 = arith.addf %248, %212 : vector<8x32xf32>
    %250 = arith.mulf %245, %249 : vector<8x32xf32>
    %251 = arith.addf %247, %250 : vector<8x32xf32>
    %252 = math.tanh %251 : vector<8x32xf32>
    %cst_49 = arith.constant 1.000000e+00 : f32
    %253 = vector.broadcast %cst_49 : f32 to vector<8x32xf32>
    %254 = arith.subf %253, %246 : vector<8x32xf32>
    %255 = arith.mulf %254, %252 : vector<8x32xf32>
    %256 = arith.mulf %246, %235 : vector<8x32xf32>
    %257 = arith.addf %255, %256 : vector<8x32xf32>
    %cst_50 = arith.constant dense<0.000000e+00> : vector<8x96xf32>
    %258 = tpu.matmul %257, %209, %cst_50 {dimension_numbers = #tpu.dot_dimension_numbers<[1], [0], [0], [1], [0, 0, 1, 1], [], []>} : vector<8x32xf32>, vector<32x96xf32>, vector<8x96xf32> -> vector<8x96xf32>
    %259 = vector.extract_strided_slice %202 {offsets = [0, 0], sizes = [8, 64], strides = [1, 1]} : vector<8x96xf32> to vector<8x64xf32>
    %260 = vector.extract_strided_slice %258 {offsets = [0, 0], sizes = [8, 64], strides = [1, 1]} : vector<8x96xf32> to vector<8x64xf32>
    %261 = arith.addf %259, %260 : vector<8x64xf32>
    %262 = arith.negf %261 : vector<8x64xf32>
    %263 = math.exp %262 : vector<8x64xf32>
    %cst_51 = arith.constant 1.000000e+00 : f32
    %264 = vector.broadcast %cst_51 : f32 to vector<8x64xf32>
    %265 = arith.addf %264, %263 : vector<8x64xf32>
    %266 = arith.divf %264, %265 : vector<8x64xf32>
    %267 = vector.extract_strided_slice %266 {offsets = [0, 0], sizes = [8, 32], strides = [1, 1]} : vector<8x64xf32> to vector<8x32xf32>
    %268 = vector.extract_strided_slice %266 {offsets = [0, 32], sizes = [8, 32], strides = [1, 1]} : vector<8x64xf32> to vector<8x32xf32>
    %269 = vector.extract_strided_slice %202 {offsets = [0, 64], sizes = [8, 32], strides = [1, 1]} : vector<8x96xf32> to vector<8x32xf32>
    %270 = vector.extract_strided_slice %258 {offsets = [0, 64], sizes = [8, 32], strides = [1, 1]} : vector<8x96xf32> to vector<8x32xf32>
    %271 = arith.addf %270, %212 : vector<8x32xf32>
    %272 = arith.mulf %267, %271 : vector<8x32xf32>
    %273 = arith.addf %269, %272 : vector<8x32xf32>
    %274 = math.tanh %273 : vector<8x32xf32>
    %cst_52 = arith.constant 1.000000e+00 : f32
    %275 = vector.broadcast %cst_52 : f32 to vector<8x32xf32>
    %276 = arith.subf %275, %268 : vector<8x32xf32>
    %277 = arith.mulf %276, %274 : vector<8x32xf32>
    %278 = arith.mulf %268, %257 : vector<8x32xf32>
    %279 = arith.addf %277, %278 : vector<8x32xf32>
    %cst_53 = arith.constant dense<0.000000e+00> : vector<8x96xf32>
    %280 = tpu.matmul %279, %209, %cst_53 {dimension_numbers = #tpu.dot_dimension_numbers<[1], [0], [0], [1], [0, 0, 1, 1], [], []>} : vector<8x32xf32>, vector<32x96xf32>, vector<8x96xf32> -> vector<8x96xf32>
    %281 = vector.extract_strided_slice %203 {offsets = [0, 0], sizes = [8, 64], strides = [1, 1]} : vector<8x96xf32> to vector<8x64xf32>
    %282 = vector.extract_strided_slice %280 {offsets = [0, 0], sizes = [8, 64], strides = [1, 1]} : vector<8x96xf32> to vector<8x64xf32>
    %283 = arith.addf %281, %282 : vector<8x64xf32>
    %284 = arith.negf %283 : vector<8x64xf32>
    %285 = math.exp %284 : vector<8x64xf32>
    %cst_54 = arith.constant 1.000000e+00 : f32
    %286 = vector.broadcast %cst_54 : f32 to vector<8x64xf32>
    %287 = arith.addf %286, %285 : vector<8x64xf32>
    %288 = arith.divf %286, %287 : vector<8x64xf32>
    %289 = vector.extract_strided_slice %288 {offsets = [0, 0], sizes = [8, 32], strides = [1, 1]} : vector<8x64xf32> to vector<8x32xf32>
    %290 = vector.extract_strided_slice %288 {offsets = [0, 32], sizes = [8, 32], strides = [1, 1]} : vector<8x64xf32> to vector<8x32xf32>
    %291 = vector.extract_strided_slice %203 {offsets = [0, 64], sizes = [8, 32], strides = [1, 1]} : vector<8x96xf32> to vector<8x32xf32>
    %292 = vector.extract_strided_slice %280 {offsets = [0, 64], sizes = [8, 32], strides = [1, 1]} : vector<8x96xf32> to vector<8x32xf32>
    %293 = arith.addf %292, %212 : vector<8x32xf32>
    %294 = arith.mulf %289, %293 : vector<8x32xf32>
    %295 = arith.addf %291, %294 : vector<8x32xf32>
    %296 = math.tanh %295 : vector<8x32xf32>
    %cst_55 = arith.constant 1.000000e+00 : f32
    %297 = vector.broadcast %cst_55 : f32 to vector<8x32xf32>
    %298 = arith.subf %297, %290 : vector<8x32xf32>
    %299 = arith.mulf %298, %296 : vector<8x32xf32>
    %300 = arith.mulf %290, %279 : vector<8x32xf32>
    %301 = arith.addf %299, %300 : vector<8x32xf32>
    %cst_56 = arith.constant dense<0.000000e+00> : vector<8x96xf32>
    %302 = tpu.matmul %301, %209, %cst_56 {dimension_numbers = #tpu.dot_dimension_numbers<[1], [0], [0], [1], [0, 0, 1, 1], [], []>} : vector<8x32xf32>, vector<32x96xf32>, vector<8x96xf32> -> vector<8x96xf32>
    %303 = vector.extract_strided_slice %204 {offsets = [0, 0], sizes = [8, 64], strides = [1, 1]} : vector<8x96xf32> to vector<8x64xf32>
    %304 = vector.extract_strided_slice %302 {offsets = [0, 0], sizes = [8, 64], strides = [1, 1]} : vector<8x96xf32> to vector<8x64xf32>
    %305 = arith.addf %303, %304 : vector<8x64xf32>
    %306 = arith.negf %305 : vector<8x64xf32>
    %307 = math.exp %306 : vector<8x64xf32>
    %cst_57 = arith.constant 1.000000e+00 : f32
    %308 = vector.broadcast %cst_57 : f32 to vector<8x64xf32>
    %309 = arith.addf %308, %307 : vector<8x64xf32>
    %310 = arith.divf %308, %309 : vector<8x64xf32>
    %311 = vector.extract_strided_slice %310 {offsets = [0, 0], sizes = [8, 32], strides = [1, 1]} : vector<8x64xf32> to vector<8x32xf32>
    %312 = vector.extract_strided_slice %310 {offsets = [0, 32], sizes = [8, 32], strides = [1, 1]} : vector<8x64xf32> to vector<8x32xf32>
    %313 = vector.extract_strided_slice %204 {offsets = [0, 64], sizes = [8, 32], strides = [1, 1]} : vector<8x96xf32> to vector<8x32xf32>
    %314 = vector.extract_strided_slice %302 {offsets = [0, 64], sizes = [8, 32], strides = [1, 1]} : vector<8x96xf32> to vector<8x32xf32>
    %315 = arith.addf %314, %212 : vector<8x32xf32>
    %316 = arith.mulf %311, %315 : vector<8x32xf32>
    %317 = arith.addf %313, %316 : vector<8x32xf32>
    %318 = math.tanh %317 : vector<8x32xf32>
    %cst_58 = arith.constant 1.000000e+00 : f32
    %319 = vector.broadcast %cst_58 : f32 to vector<8x32xf32>
    %320 = arith.subf %319, %312 : vector<8x32xf32>
    %321 = arith.mulf %320, %318 : vector<8x32xf32>
    %322 = arith.mulf %312, %301 : vector<8x32xf32>
    %323 = arith.addf %321, %322 : vector<8x32xf32>
    %cst_59 = arith.constant dense<0.000000e+00> : vector<8x96xf32>
    %324 = tpu.matmul %323, %209, %cst_59 {dimension_numbers = #tpu.dot_dimension_numbers<[1], [0], [0], [1], [0, 0, 1, 1], [], []>} : vector<8x32xf32>, vector<32x96xf32>, vector<8x96xf32> -> vector<8x96xf32>
    %325 = vector.extract_strided_slice %205 {offsets = [0, 0], sizes = [8, 64], strides = [1, 1]} : vector<8x96xf32> to vector<8x64xf32>
    %326 = vector.extract_strided_slice %324 {offsets = [0, 0], sizes = [8, 64], strides = [1, 1]} : vector<8x96xf32> to vector<8x64xf32>
    %327 = arith.addf %325, %326 : vector<8x64xf32>
    %328 = arith.negf %327 : vector<8x64xf32>
    %329 = math.exp %328 : vector<8x64xf32>
    %cst_60 = arith.constant 1.000000e+00 : f32
    %330 = vector.broadcast %cst_60 : f32 to vector<8x64xf32>
    %331 = arith.addf %330, %329 : vector<8x64xf32>
    %332 = arith.divf %330, %331 : vector<8x64xf32>
    %333 = vector.extract_strided_slice %332 {offsets = [0, 0], sizes = [8, 32], strides = [1, 1]} : vector<8x64xf32> to vector<8x32xf32>
    %334 = vector.extract_strided_slice %332 {offsets = [0, 32], sizes = [8, 32], strides = [1, 1]} : vector<8x64xf32> to vector<8x32xf32>
    %335 = vector.extract_strided_slice %205 {offsets = [0, 64], sizes = [8, 32], strides = [1, 1]} : vector<8x96xf32> to vector<8x32xf32>
    %336 = vector.extract_strided_slice %324 {offsets = [0, 64], sizes = [8, 32], strides = [1, 1]} : vector<8x96xf32> to vector<8x32xf32>
    %337 = arith.addf %336, %212 : vector<8x32xf32>
    %338 = arith.mulf %333, %337 : vector<8x32xf32>
    %339 = arith.addf %335, %338 : vector<8x32xf32>
    %340 = math.tanh %339 : vector<8x32xf32>
    %cst_61 = arith.constant 1.000000e+00 : f32
    %341 = vector.broadcast %cst_61 : f32 to vector<8x32xf32>
    %342 = arith.subf %341, %334 : vector<8x32xf32>
    %343 = arith.mulf %342, %340 : vector<8x32xf32>
    %344 = arith.mulf %334, %323 : vector<8x32xf32>
    %345 = arith.addf %343, %344 : vector<8x32xf32>
    %cst_62 = arith.constant dense<0.000000e+00> : vector<8x96xf32>
    %346 = tpu.matmul %345, %209, %cst_62 {dimension_numbers = #tpu.dot_dimension_numbers<[1], [0], [0], [1], [0, 0, 1, 1], [], []>} : vector<8x32xf32>, vector<32x96xf32>, vector<8x96xf32> -> vector<8x96xf32>
    %347 = vector.extract_strided_slice %206 {offsets = [0, 0], sizes = [8, 64], strides = [1, 1]} : vector<8x96xf32> to vector<8x64xf32>
    %348 = vector.extract_strided_slice %346 {offsets = [0, 0], sizes = [8, 64], strides = [1, 1]} : vector<8x96xf32> to vector<8x64xf32>
    %349 = arith.addf %347, %348 : vector<8x64xf32>
    %350 = arith.negf %349 : vector<8x64xf32>
    %351 = math.exp %350 : vector<8x64xf32>
    %cst_63 = arith.constant 1.000000e+00 : f32
    %352 = vector.broadcast %cst_63 : f32 to vector<8x64xf32>
    %353 = arith.addf %352, %351 : vector<8x64xf32>
    %354 = arith.divf %352, %353 : vector<8x64xf32>
    %355 = vector.extract_strided_slice %354 {offsets = [0, 0], sizes = [8, 32], strides = [1, 1]} : vector<8x64xf32> to vector<8x32xf32>
    %356 = vector.extract_strided_slice %354 {offsets = [0, 32], sizes = [8, 32], strides = [1, 1]} : vector<8x64xf32> to vector<8x32xf32>
    %357 = vector.extract_strided_slice %206 {offsets = [0, 64], sizes = [8, 32], strides = [1, 1]} : vector<8x96xf32> to vector<8x32xf32>
    %358 = vector.extract_strided_slice %346 {offsets = [0, 64], sizes = [8, 32], strides = [1, 1]} : vector<8x96xf32> to vector<8x32xf32>
    %359 = arith.addf %358, %212 : vector<8x32xf32>
    %360 = arith.mulf %355, %359 : vector<8x32xf32>
    %361 = arith.addf %357, %360 : vector<8x32xf32>
    %362 = math.tanh %361 : vector<8x32xf32>
    %cst_64 = arith.constant 1.000000e+00 : f32
    %363 = vector.broadcast %cst_64 : f32 to vector<8x32xf32>
    %364 = arith.subf %363, %356 : vector<8x32xf32>
    %365 = arith.mulf %364, %362 : vector<8x32xf32>
    %366 = arith.mulf %356, %345 : vector<8x32xf32>
    %367 = arith.addf %365, %366 : vector<8x32xf32>
    %cst_65 = arith.constant dense<0.000000e+00> : vector<8x96xf32>
    %368 = tpu.matmul %367, %209, %cst_65 {dimension_numbers = #tpu.dot_dimension_numbers<[1], [0], [0], [1], [0, 0, 1, 1], [], []>} : vector<8x32xf32>, vector<32x96xf32>, vector<8x96xf32> -> vector<8x96xf32>
    %369 = vector.extract_strided_slice %207 {offsets = [0, 0], sizes = [8, 64], strides = [1, 1]} : vector<8x96xf32> to vector<8x64xf32>
    %370 = vector.extract_strided_slice %368 {offsets = [0, 0], sizes = [8, 64], strides = [1, 1]} : vector<8x96xf32> to vector<8x64xf32>
    %371 = arith.addf %369, %370 : vector<8x64xf32>
    %372 = arith.negf %371 : vector<8x64xf32>
    %373 = math.exp %372 : vector<8x64xf32>
    %cst_66 = arith.constant 1.000000e+00 : f32
    %374 = vector.broadcast %cst_66 : f32 to vector<8x64xf32>
    %375 = arith.addf %374, %373 : vector<8x64xf32>
    %376 = arith.divf %374, %375 : vector<8x64xf32>
    %377 = vector.extract_strided_slice %376 {offsets = [0, 0], sizes = [8, 32], strides = [1, 1]} : vector<8x64xf32> to vector<8x32xf32>
    %378 = vector.extract_strided_slice %376 {offsets = [0, 32], sizes = [8, 32], strides = [1, 1]} : vector<8x64xf32> to vector<8x32xf32>
    %379 = vector.extract_strided_slice %207 {offsets = [0, 64], sizes = [8, 32], strides = [1, 1]} : vector<8x96xf32> to vector<8x32xf32>
    %380 = vector.extract_strided_slice %368 {offsets = [0, 64], sizes = [8, 32], strides = [1, 1]} : vector<8x96xf32> to vector<8x32xf32>
    %381 = arith.addf %380, %212 : vector<8x32xf32>
    %382 = arith.mulf %377, %381 : vector<8x32xf32>
    %383 = arith.addf %379, %382 : vector<8x32xf32>
    %384 = math.tanh %383 : vector<8x32xf32>
    %cst_67 = arith.constant 1.000000e+00 : f32
    %385 = vector.broadcast %cst_67 : f32 to vector<8x32xf32>
    %386 = arith.subf %385, %378 : vector<8x32xf32>
    %387 = arith.mulf %386, %384 : vector<8x32xf32>
    %388 = arith.mulf %378, %367 : vector<8x32xf32>
    %389 = arith.addf %387, %388 : vector<8x32xf32>
    %c0_68 = arith.constant 0 : index
    %c0_69 = arith.constant 0 : index
    %390 = vector.load %arg9[%c0_68, %c0_69] : memref<32x32xf32, #tpu.memory_space<vmem>>, vector<32x32xf32>
    %cst_70 = arith.constant dense<0.000000e+00> : vector<8x32xf32>
    %391 = tpu.matmul %389, %390, %cst_70 {dimension_numbers = #tpu.dot_dimension_numbers<[1], [0], [0], [1], [0, 0, 1, 1], [], []>} : vector<8x32xf32>, vector<32x32xf32>, vector<8x32xf32> -> vector<8x32xf32>
    %c0_71 = arith.constant 0 : index
    %c0_72 = arith.constant 0 : index
    %392 = vector.load %arg10[%c0_71, %c0_72] : memref<1x32xf32, #tpu.memory_space<vmem>>, vector<1x32xf32>
    %393 = vector.broadcast %392 : vector<1x32xf32> to vector<8x32xf32>
    %394 = arith.addf %391, %393 : vector<8x32xf32>
    %395 = tpu.concatenate %394, %208 in 1 : vector<8x32xf32>, vector<8x16xf32> -> vector<8x48xf32>
    %c0_73 = arith.constant 0 : index
    %c0_74 = arith.constant 0 : index
    %396 = vector.load %arg11[%c0_73, %c0_74] : memref<8x48xf32, #tpu.memory_space<vmem>>, vector<8x48xf32>
    tpu.vector_store %arg11[%c0_73, %c0_74], %395 {strides = array<i32>} : memref<8x48xf32, #tpu.memory_space<vmem>>, vector<8x48xf32>,
    return
  }
}

</mosaic_0001>

<llo_original>
// kernel: ae_forward.1
$region0: #{ae_forward.1}
  #allocation0 [shape = 'u32[]', space=smem, size = 0x4, offset = 0x4, fixed_abs, tag = 'smem constant byte address 0x4 - core index']
  #allocation1 [shape = 'u32[144,128]{1,0:T(1,128)}', space=vmem, size = 0x12000, scoped, tag = 'internal scratch']
  %s0 = inlined_call_operand.vmem [shape: f32[64,4], index: 0, kind: input, shape index: {}]
  %s1 = inlined_call_operand.vmem [shape: f32[4,96], index: 1, kind: input, shape index: {}]
  %s2 = inlined_call_operand.vmem [shape: f32[32,96], index: 2, kind: input, shape index: {}]
  %s3 = inlined_call_operand.vmem [shape: f32[1,96], index: 3, kind: input, shape index: {}]
  %s4 = inlined_call_operand.vmem [shape: f32[1,32], index: 4, kind: input, shape index: {}]
  %s5 = inlined_call_operand.hbm [shape: f32[32,1040], index: 5, kind: input, shape index: {}]
  %s6 = inlined_call_operand.vmem [shape: f32[1,1040], index: 6, kind: input, shape index: {}]
  %s7 = inlined_call_operand.vmem [shape: f32[32,96], index: 7, kind: input, shape index: {}]
  %s8 = inlined_call_operand.vmem [shape: f32[1,32], index: 8, kind: input, shape index: {}]
  %s9 = inlined_call_operand.vmem [shape: f32[32,32], index: 9, kind: input, shape index: {}]
  %s10 = inlined_call_operand.vmem [shape: f32[1,32], index: 10, kind: input, shape index: {}]
  %s11 = inlined_call_operand.vmem [shape: f32[8,48], index: 11, kind: output, shape index: {}]
  %s12 = sld [smem:[#allocation0]]
  $region58: #{ae_forward.1} parent=0
    _
  %s14 = ssub.s32 1, %s12
  %s15 = scalar_select 0, %s14, %s12
  $region1: #{ae_forward.1} parent=0
    #allocation2 [shape = 'u8[147456]{0}', space=vmem, size = 0x24000, scoped, tag = 'input window, operand 5, single buffered']
    #allocation3 [shape = 's32[1]{0}', space=sflag, size = 0x4, scoped, tag = 'scoped memory for ae_forward.1']
    %16 = vsyncpa [#allocation3], 0
    // Predicated region
    $region2: #{ae_forward.1} parent=1 // pred_check
      _
    $region3: #{ae_forward.1} parent=1 // pred_check_branch
      %18 = sbr.rel (0) target = $region5
    $region4: #{ae_forward.1} parent=1 // pred_region
      _
    $region5: #{ae_forward.1} parent=1 // pred_fallthru
      _
    // Predicated region
    $region6: #{ae_forward.1} parent=1 // pred_check
      _
    $region7: #{ae_forward.1} parent=1 // pred_check_branch
      %20 = sbr.rel (0) target = $region9
    $region8: #{ae_forward.1} parent=1 // pred_region
      _
    $region9: #{ae_forward.1} parent=1 // pred_fallthru
      _
    // Predicated region
    $region10: #{ae_forward.1} parent=1 // pred_check
      _
    $region11: #{ae_forward.1} parent=1 // pred_check_branch
      %22 = sbr.rel (0) target = $region13
    $region12: #{ae_forward.1} parent=1 // pred_region
      _
    $region13: #{ae_forward.1} parent=1 // pred_fallthru
      _
    // Predicated region
    $region14: #{ae_forward.1} parent=1 // pred_check
      _
    $region15: #{ae_forward.1} parent=1 // pred_check_branch
      %24 = sbr.rel (0) target = $region17
    $region16: #{ae_forward.1} parent=1 // pred_region
      _
    $region17: #{ae_forward.1} parent=1 // pred_fallthru
      _
    // Predicated region
    $region18: #{ae_forward.1} parent=1 // pred_check
      _
    $region19: #{ae_forward.1} parent=1 // pred_check_branch
      %26 = sbr.rel (0) target = $region21
    $region20: #{ae_forward.1} parent=1 // pred_region
      _
    $region21: #{ae_forward.1} parent=1 // pred_fallthru
      _
    // Predicated region
    $region22: #{ae_forward.1} parent=1 // pred_check
      _
    $region23: #{ae_forward.1} parent=1 // pred_check_branch
      %28 = sbr.rel (0) target = $region25
    $region24: #{ae_forward.1} parent=1 // pred_region
      %s30 = ssub.s32 4608, 4608
      %31 = vsyncadd [#allocation3], %s30
      %s32 = sshll.u32 [#allocation2], 4
      %s33 = int_to_ptr.vmem [resolvable:$true] %s32
      %38 = dma.hbm_to_vmem [thread:$0]  %s5, 4608, %s33, [#allocation3], 1152, 1152, 72
    $region25: #{ae_forward.1} parent=1 // pred_fallthru
      _
    // Predicated region
    $region26: #{ae_forward.1} parent=1 // pred_check
      _
    $region27: #{ae_forward.1} parent=1 // pred_check_branch
      %40 = sbr.rel (0) target = $region29
    $region28: #{ae_forward.1} parent=1 // pred_region
      _
    $region29: #{ae_forward.1} parent=1 // pred_fallthru
      _
    // Predicated region
    $region30: #{ae_forward.1} parent=1 // pred_check
      _
    $region31: #{ae_forward.1} parent=1 // pred_check_branch
      %42 = sbr.rel (0) target = $region33
    $region32: #{ae_forward.1} parent=1 // pred_region
      _
    $region33: #{ae_forward.1} parent=1 // pred_fallthru
      _
    // Predicated region
    $region34: #{ae_forward.1} parent=1 // pred_check
      _
    $region35: #{ae_forward.1} parent=1 // pred_check_branch
      %44 = sbr.rel (0) target = $region37
    $region36: #{ae_forward.1} parent=1 // pred_region
      _
    $region37: #{ae_forward.1} parent=1 // pred_fallthru
      _
    // Predicated region
    $region38: #{ae_forward.1} parent=1 // pred_check
      _
    $region39: #{ae_forward.1} parent=1 // pred_check_branch
      %46 = sbr.rel (0) target = $region41
    $region40: #{ae_forward.1} parent=1 // pred_region
      _
    $region41: #{ae_forward.1} parent=1 // pred_fallthru
      _
    // Predicated region
    $region42: #{ae_forward.1} parent=1 // pred_check
      _
    $region43: #{ae_forward.1} parent=1 // pred_check_branch
      %48 = sbr.rel (0) target = $region45
    $region44: #{ae_forward.1} parent=1 // pred_region
      _
    $region45: #{ae_forward.1} parent=1 // pred_fallthru
      _
    // Predicated region
    $region46: #{ae_forward.1} parent=1 // pred_check
      _
    $region47: #{ae_forward.1} parent=1 // pred_check_branch
      %50 = sbr.rel (0) target = $region49
    $region48: #{ae_forward.1} parent=1 // pred_region
      %51 = dma.done [#allocation3], 4608
    $region49: #{ae_forward.1} parent=1 // pred_fallthru
      _
    %v52 = vld [vmem:[%s0] sm:$0xff]
    %v53 = vld [vmem:[%s0 + $0x8] sm:$0xff]
    %v54 = vld [vmem:[%s0 + $0x10] sm:$0xff]
    %v55 = vld [vmem:[%s0 + $0x18] sm:$0xff]
    %v56 = vld [vmem:[%s0 + $0x20] sm:$0xff]
    %v57 = vld [vmem:[%s0 + $0x28] sm:$0xff]
    %v58 = vld [vmem:[%s0 + $0x30] sm:$0xff]
    %v59 = vld [vmem:[%s0 + $0x38] sm:$0xff]
    %v60 = vld [vmem:[%s1] sm:$0xf]
    %v61 = vld [vmem:[%s3] sm:$0x1]
    %v63 = vlaneseq
    %v64 = vshrl.u32 %v63, 7
    %v65 = vsub.s32 0, %v64
    %v66 = vrot.slane %v61, %v65
    %vm68 = vcmask 31744
    %v70 = vsel %vm68, %v52, 0
    %v73 = vsel %vm68, %v53, 0
    %v76 = vsel %vm68, %v54, 0
    %v79 = vsel %vm68, %v55, 0
    %v82 = vsel %vm68, %v56, 0
    %v85 = vsel %vm68, %v57, 0
    %v88 = vsel %vm68, %v58, 0
    %v91 = vsel %vm68, %v59, 0
    %vm93 = vcmask 1043456
    %v95 = vsel %vm93, %v60, 0
    %97 = vmatprep.subr.mxu0 0.0
    %98 = vmatpush1.msra.mxu0 %v95
    %99 = vmatprep.subr.mxu0 0.0
    %100 = vmatpush1.msra.mxu0 0.0
    %101 = vmatprep.subr.mxu0 0.0
    %102 = vmatpush1.msra.mxu0 0.0
    %103 = vmatprep.subr.mxu0 0.0
    %104 = vmatpush1.msra.mxu0 0.0
    %105 = vmatprep.subr.mxu0 0.0
    %106 = vmatpush1.msra.mxu0 0.0
    %107 = vmatprep.subr.mxu0 0.0
    %108 = vmatpush1.msra.mxu0 0.0
    %109 = vmatprep.subr.mxu0 0.0
    %110 = vmatpush1.msra.mxu0 0.0
    %111 = vmatprep.subr.mxu0 0.0
    %112 = vmatpush1.msra.mxu0 0.0
    %113 = vmatprep.subr.mxu0 0.0
    %114 = vmatpush1.msra.mxu0 0.0
    %115 = vmatprep.subr.mxu0 0.0
    %116 = vmatpush1.msra.mxu0 0.0
    %117 = vmatprep.subr.mxu0 0.0
    %118 = vmatpush1.msra.mxu0 0.0
    %119 = vmatprep.subr.mxu0 0.0
    %120 = vmatpush1.msra.mxu0 0.0
    %121 = vmatprep.subr.mxu0 0.0
    %122 = vmatpush1.msra.mxu0 0.0
    %123 = vmatprep.subr.mxu0 0.0
    %124 = vmatpush1.msra.mxu0 0.0
    %125 = vmatprep.subr.mxu0 0.0
    %126 = vmatpush1.msra.mxu0 0.0
    %127 = vmatprep.subr.mxu0 0.0
    %128 = vmatpush1.msra.mxu0 0.0
    %129 = vmatprep.subr.mxu0 0.0
    %130 = vmatpush1.msra.mxu0 0.0
    %131 = vmatprep.subr.mxu0 0.0
    %132 = vmatpush1.msra.mxu0 0.0
    %133 = vmatprep.subr.mxu0 0.0
    %134 = vmatpush1.msra.mxu0 0.0
    %135 = vmatprep.subr.mxu0 0.0
    %136 = vmatpush1.msra.mxu0 0.0
    %137 = vmatprep.subr.mxu0 0.0
    %138 = vmatpush1.msra.mxu0 0.0
    %139 = vmatprep.subr.mxu0 0.0
    %140 = vmatpush1.msra.mxu0 0.0
    %141 = vmatprep.subr.mxu0 0.0
    %142 = vmatpush1.msra.mxu0 0.0
    %143 = vmatprep.subr.mxu0 0.0
    %144 = vmatpush1.msra.mxu0 0.0
    %145 = vmatprep.subr.mxu0 0.0
    %146 = vmatpush1.msra.mxu0 0.0
    %147 = vmatprep.subr.mxu0 0.0
    %148 = vmatpush1.msra.mxu0 0.0
    %149 = vmatprep.subr.mxu0 0.0
    %150 = vmatpush1.msra.mxu0 0.0
    %151 = vmatprep.subr.mxu0 0.0
    %152 = vmatpush1.msra.mxu0 0.0
    %153 = vmatprep.subr.mxu0 0.0
    %154 = vmatpush1.msra.mxu0 0.0
    %155 = vmatprep.subr.mxu0 0.0
    %156 = vmatpush1.msra.mxu0 0.0
    %157 = vmatprep.subr.mxu0 0.0
    %158 = vmatpush1.msra.mxu0 0.0
    %159 = vmatprep.subr.mxu0 0.0
    %160 = vmatpush1.msra.mxu0 0.0
    %161 = vmatprep.mubr.f32.mxu0 0.0
    %162 = vmatmul.mubr.f32.gmra.mrb[0].mxu0 %v70
    %v163 = vpop.f32.mrb[0].mxu0
    %v164 = vadd.f32 %v66, %v163
    %v165 = vpop.f32.mrb[0].mxu0
    %166 = vmatprep.mubr.f32.mxu0 0.0
    %167 = vmatmul.mubr.f32.gmra.mrb[0].mxu0 %v73
    %v168 = vpop.f32.mrb[0].mxu0
    %v169 = vadd.f32 %v66, %v168
    %v170 = vpop.f32.mrb[0].mxu0
    %171 = vmatprep.mubr.f32.mxu0 0.0
    %172 = vmatmul.mubr.f32.gmra.mrb[0].mxu0 %v76
    %v173 = vpop.f32.mrb[0].mxu0
    %v174 = vadd.f32 %v66, %v173
    %v175 = vpop.f32.mrb[0].mxu0
    %176 = vmatprep.mubr.f32.mxu0 0.0
    %177 = vmatmul.mubr.f32.gmra.mrb[0].mxu0 %v79
    %v178 = vpop.f32.mrb[0].mxu0
    %v179 = vadd.f32 %v66, %v178
    %v180 = vpop.f32.mrb[0].mxu0
    %181 = vmatprep.mubr.f32.mxu0 0.0
    %182 = vmatmul.mubr.f32.gmra.mrb[0].mxu0 %v82
    %v183 = vpop.f32.mrb[0].mxu0
    %v184 = vadd.f32 %v66, %v183
    %v185 = vpop.f32.mrb[0].mxu0
    %186 = vmatprep.mubr.f32.mxu0 0.0
    %187 = vmatmul.mubr.f32.gmra.mrb[0].mxu0 %v85
    %v188 = vpop.f32.mrb[0].mxu0
    %v189 = vadd.f32 %v66, %v188
    %v190 = vpop.f32.mrb[0].mxu0
    %191 = vmatprep.mubr.f32.mxu0 0.0
    %192 = vmatmul.mubr.f32.gmra.mrb[0].mxu0 %v88
    %v193 = vpop.f32.mrb[0].mxu0
    %v194 = vadd.f32 %v66, %v193
    %v195 = vpop.f32.mrb[0].mxu0
    %196 = vmatprep.mubr.f32.mxu0 0.0
    %197 = vmatmul.mubr.f32.gmra.mrb[0].mxu0 %v91
    %v198 = vpop.f32.mrb[0].mxu0
    %v199 = vadd.f32 %v66, %v198
    %v200 = vpop.f32.mrb[0].mxu0
    %201 = vdwg.mxu0
    %v202 = vld [vmem:[%s2] sm:$0xff]
    %v203 = vld [vmem:[%s2 + $0x8] sm:$0xff]
    %v204 = vld [vmem:[%s2 + $0x10] sm:$0xff]
    %v205 = vld [vmem:[%s2 + $0x18] sm:$0xff]
    %v206 = vld [vmem:[%s4] sm:$0x1]
    %v208 = vlaneseq
    %v209 = vshrl.u32 %v208, 7
    %v210 = vsub.s32 0, %v209
    %v211 = vrot.slane %v206, %v210
    %vm212 = vcmask 261120
    %v214 = vsel %vm212, 0.0, 0
    %216 = vmatprep.subr.mxu0 0.0
    %217 = vmatpush1.msra.mxu0 %v202
    %218 = vmatprep.subr.mxu0 0.0
    %219 = vmatpush1.msra.mxu0 %v203
    %220 = vmatprep.subr.mxu0 0.0
    %221 = vmatpush1.msra.mxu0 %v204
    %222 = vmatprep.subr.mxu0 0.0
    %223 = vmatpush1.msra.mxu0 %v205
    %224 = vmatprep.subr.mxu0 0.0
    %225 = vmatpush1.msra.mxu0 0.0
    %226 = vmatprep.subr.mxu0 0.0
    %227 = vmatpush1.msra.mxu0 0.0
    %228 = vmatprep.subr.mxu0 0.0
    %229 = vmatpush1.msra.mxu0 0.0
    %230 = vmatprep.subr.mxu0 0.0
    %231 = vmatpush1.msra.mxu0 0.0
    %232 = vmatprep.subr.mxu0 0.0
    %233 = vmatpush1.msra.mxu0 0.0
    %234 = vmatprep.subr.mxu0 0.0
    %235 = vmatpush1.msra.mxu0 0.0
    %236 = vmatprep.subr.mxu0 0.0
    %237 = vmatpush1.msra.mxu0 0.0
    %238 = vmatprep.subr.mxu0 0.0
    %239 = vmatpush1.msra.mxu0 0.0
    %240 = vmatprep.subr.mxu0 0.0
    %241 = vmatpush1.msra.mxu0 0.0
    %242 = vmatprep.subr.mxu0 0.0
    %243 = vmatpush1.msra.mxu0 0.0
    %244 = vmatprep.subr.mxu0 0.0
    %245 = vmatpush1.msra.mxu0 0.0
    %246 = vmatprep.subr.mxu0 0.0
    %247 = vmatpush1.msra.mxu0 0.0
    %248 = vmatprep.subr.mxu0 0.0
    %249 = vmatpush1.msra.mxu0 0.0
    %250 = vmatprep.subr.mxu0 0.0
    %251 = vmatpush1.msra.mxu0 0.0
    %252 = vmatprep.subr.mxu0 0.0
    %253 = vmatpush1.msra.mxu0 0.0
    %254 = vmatprep.subr.mxu0 0.0
    %255 = vmatpush1.msra.mxu0 0.0
    %256 = vmatprep.subr.mxu0 0.0
    %257 = vmatpush1.msra.mxu0 0.0
    %258 = vmatprep.subr.mxu0 0.0
    %259 = vmatpush1.msra.mxu0 0.0
    %260 = vmatprep.subr.mxu0 0.0
    %261 = vmatpush1.msra.mxu0 0.0
    %262 = vmatprep.subr.mxu0 0.0
    %263 = vmatpush1.msra.mxu0 0.0
    %264 = vmatprep.subr.mxu0 0.0
    %265 = vmatpush1.msra.mxu0 0.0
    %266 = vmatprep.subr.mxu0 0.0
    %267 = vmatpush1.msra.mxu0 0.0
    %268 = vmatprep.subr.mxu0 0.0
    %269 = vmatpush1.msra.mxu0 0.0
    %270 = vmatprep.subr.mxu0 0.0
    %271 = vmatpush1.msra.mxu0 0.0
    %272 = vmatprep.subr.mxu0 0.0
    %273 = vmatpush1.msra.mxu0 0.0
    %274 = vmatprep.subr.mxu0 0.0
    %275 = vmatpush1.msra.mxu0 0.0
    %276 = vmatprep.subr.mxu0 0.0
    %277 = vmatpush1.msra.mxu0 0.0
    %278 = vmatprep.subr.mxu0 0.0
    %279 = vmatpush1.msra.mxu0 0.0
    %280 = vmatprep.mubr.f32.mxu0 0.0
    %281 = vmatmul.mubr.f32.gmra.mrb[0].mxu0 %v214
    %v282 = vpop.f32.mrb[0].mxu0
    %v283 = vadd.f32 0.0, %v282
    %v284 = vpop.f32.mrb[0].mxu0
    %285 = vdwg.mxu0
    %v286 = vadd.f32 %v164, %v283
    %v287 = vxor.u32 %v286, 2147483648
    %v288 = vmul.f32 %v287, 1.442695
    %v289 = vpow.pop %v288
    %v290 = vadd.f32 %v289, 1.0
    %v291 = vrcp.pop %v290
    %v292 = vmul.f32 1.0, %v291
    %293 = vrot.lane.b32.xlu0 %v211, 64
    %v294 = vpop.permute.xlu0 %293
    %v296 = vadd.f32 %v283, %v294
    %298 = vrot.lane.b32.xlu0 %v296, 64
    %v299 = vpop.permute.xlu0 %298
    %v301 = vmul.f32 %v292, %v299
    %303 = vrot.lane.b32.xlu0 %v301, 64
    %v304 = vpop.permute.xlu0 %303
    %v306 = vadd.f32 %v164, %v304
    %v307 = vtanh.pop %v306
    %v308 = vsub.f32 1.0, %v292
    %310 = vrot.lane.b32.xlu0 %v307, 96
    %v311 = vpop.permute.xlu0 %310
    %v313 = vmul.f32 %v308, %v311
    %v314 = vmul.f32 %v292, 0.0
    %v315 = vadd.f32 %v313, %v314
    %317 = vrot.lane.b32.xlu0 %v315, 96
    %v318 = vpop.permute.xlu0 %317
    %v319 = vsel %vm212, %v318, 0
    %321 = vmatprep.subr.mxu0 0.0
    %322 = vmatpush1.msra.mxu0 %v202
    %323 = vmatprep.subr.mxu0 0.0
    %324 = vmatpush1.msra.mxu0 %v203
    %325 = vmatprep.subr.mxu0 0.0
    %326 = vmatpush1.msra.mxu0 %v204
    %327 = vmatprep.subr.mxu0 0.0
    %328 = vmatpush1.msra.mxu0 %v205
    %329 = vmatprep.subr.mxu0 0.0
    %330 = vmatpush1.msra.mxu0 0.0
    %331 = vmatprep.subr.mxu0 0.0
    %332 = vmatpush1.msra.mxu0 0.0
    %333 = vmatprep.subr.mxu0 0.0
    %334 = vmatpush1.msra.mxu0 0.0
    %335 = vmatprep.subr.mxu0 0.0
    %336 = vmatpush1.msra.mxu0 0.0
    %337 = vmatprep.subr.mxu0 0.0
    %338 = vmatpush1.msra.mxu0 0.0
    %339 = vmatprep.subr.mxu0 0.0
    %340 = vmatpush1.msra.mxu0 0.0
    %341 = vmatprep.subr.mxu0 0.0
    %342 = vmatpush1.msra.mxu0 0.0
    %343 = vmatprep.subr.mxu0 0.0
    %344 = vmatpush1.msra.mxu0 0.0
    %345 = vmatprep.subr.mxu0 0.0
    %346 = vmatpush1.msra.mxu0 0.0
    %347 = vmatprep.subr.mxu0 0.0
    %348 = vmatpush1.msra.mxu0 0.0
    %349 = vmatprep.subr.mxu0 0.0
    %350 = vmatpush1.msra.mxu0 0.0
    %351 = vmatprep.subr.mxu0 0.0
    %352 = vmatpush1.msra.mxu0 0.0
    %353 = vmatprep.subr.mxu0 0.0
    %354 = vmatpush1.msra.mxu0 0.0
    %355 = vmatprep.subr.mxu0 0.0
    %356 = vmatpush1.msra.mxu0 0.0
    %357 = vmatprep.subr.mxu0 0.0
    %358 = vmatpush1.msra.mxu0 0.0
    %359 = vmatprep.subr.mxu0 0.0
    %360 = vmatpush1.msra.mxu0 0.0
    %361 = vmatprep.subr.mxu0 0.0
    %362 = vmatpush1.msra.mxu0 0.0
    %363 = vmatprep.subr.mxu0 0.0
    %364 = vmatpush1.msra.mxu0 0.0
    %365 = vmatprep.subr.mxu0 0.0
    %366 = vmatpush1.msra.mxu0 0.0
    %367 = vmatprep.subr.mxu0 0.0
    %368 = vmatpush1.msra.mxu0 0.0
    %369 = vmatprep.subr.mxu0 0.0
    %370 = vmatpush1.msra.mxu0 0.0
    %371 = vmatprep.subr.mxu0 0.0
    %372 = vmatpush1.msra.mxu0 0.0
    %373 = vmatprep.subr.mxu0 0.0
    %374 = vmatpush1.msra.mxu0 0.0
    %375 = vmatprep.subr.mxu0 0.0
    %376 = vmatpush1.msra.mxu0 0.0
    %377 = vmatprep.subr.mxu0 0.0
    %378 = vmatpush1.msra.mxu0 0.0
    %379 = vmatprep.subr.mxu0 0.0
    %380 = vmatpush1.msra.mxu0 0.0
    %381 = vmatprep.subr.mxu0 0.0
    %382 = vmatpush1.msra.mxu0 0.0
    %383 = vmatprep.subr.mxu0 0.0
    %384 = vmatpush1.msra.mxu0 0.0
    %385 = vmatprep.mubr.f32.mxu0 0.0
    %386 = vmatmul.mubr.f32.gmra.mrb[0].mxu0 %v319
    %v387 = vpop.f32.mrb[0].mxu0
    %v388 = vadd.f32 0.0, %v387
    %v389 = vpop.f32.mrb[0].mxu0
    %390 = vdwg.mxu0
    %v391 = vadd.f32 %v169, %v388
    %v392 = vxor.u32 %v391, 2147483648
    %v393 = vmul.f32 %v392, 1.442695
    %v394 = vpow.pop %v393
    %v395 = vadd.f32 %v394, 1.0
    %v396 = vrcp.pop %v395
    %v397 = vmul.f32 1.0, %v396
    %v398 = vadd.f32 %v388, %v294
    %400 = vrot.lane.b32.xlu0 %v398, 64
    %v401 = vpop.permute.xlu0 %400
    %v403 = vmul.f32 %v397, %v401
    %405 = vrot.lane.b32.xlu0 %v403, 64
    %v406 = vpop.permute.xlu0 %405
    %v408 = vadd.f32 %v169, %v406
    %v409 = vtanh.pop %v408
    %v410 = vsub.f32 1.0, %v397
    %412 = vrot.lane.b32.xlu0 %v409, 96
    %v413 = vpop.permute.xlu0 %412
    %v415 = vmul.f32 %v410, %v413
    %v416 = vmul.f32 %v397, %v315
    %v417 = vadd.f32 %v415, %v416
    %419 = vrot.lane.b32.xlu0 %v417, 96
    %v420 = vpop.permute.xlu0 %419
    %v421 = vsel %vm212, %v420, 0
    %423 = vmatprep.subr.mxu0 0.0
    %424 = vmatpush1.msra.mxu0 %v202
    %425 = vmatprep.subr.mxu0 0.0
    %426 = vmatpush1.msra.mxu0 %v203
    %427 = vmatprep.subr.mxu0 0.0
    %428 = vmatpush1.msra.mxu0 %v204
    %429 = vmatprep.subr.mxu0 0.0
    %430 = vmatpush1.msra.mxu0 %v205
    %431 = vmatprep.subr.mxu0 0.0
    %432 = vmatpush1.msra.mxu0 0.0
    %433 = vmatprep.subr.mxu0 0.0
    %434 = vmatpush1.msra.mxu0 0.0
    %435 = vmatprep.subr.mxu0 0.0
    %436 = vmatpush1.msra.mxu0 0.0
    %437 = vmatprep.subr.mxu0 0.0
    %438 = vmatpush1.msra.mxu0 0.0
    %439 = vmatprep.subr.mxu0 0.0
    %440 = vmatpush1.msra.mxu0 0.0
    %441 = vmatprep.subr.mxu0 0.0
    %442 = vmatpush1.msra.mxu0 0.0
    %443 = vmatprep.subr.mxu0 0.0
    %444 = vmatpush1.msra.mxu0 0.0
    %445 = vmatprep.subr.mxu0 0.0
    %446 = vmatpush1.msra.mxu0 0.0
    %447 = vmatprep.subr.mxu0 0.0
    %448 = vmatpush1.msra.mxu0 0.0
    %449 = vmatprep.subr.mxu0 0.0
    %450 = vmatpush1.msra.mxu0 0.0
    %451 = vmatprep.subr.mxu0 0.0
    %452 = vmatpush1.msra.mxu0 0.0
    %453 = vmatprep.subr.mxu0 0.0
    %454 = vmatpush1.msra.mxu0 0.0
    %455 = vmatprep.subr.mxu0 0.0
    %456 = vmatpush1.msra.mxu0 0.0
    %457 = vmatprep.subr.mxu0 0.0
    %458 = vmatpush1.msra.mxu0 0.0
    %459 = vmatprep.subr.mxu0 0.0
    %460 = vmatpush1.msra.mxu0 0.0
    %461 = vmatprep.subr.mxu0 0.0
    %462 = vmatpush1.msra.mxu0 0.0
    %463 = vmatprep.subr.mxu0 0.0
    %464 = vmatpush1.msra.mxu0 0.0
    %465 = vmatprep.subr.mxu0 0.0
    %466 = vmatpush1.msra.mxu0 0.0
    %467 = vmatprep.subr.mxu0 0.0
    %468 = vmatpush1.msra.mxu0 0.0
    %469 = vmatprep.subr.mxu0 0.0
    %470 = vmatpush1.msra.mxu0 0.0
    %471 = vmatprep.subr.mxu0 0.0
    %472 = vmatpush1.msra.mxu0 0.0
    %473 = vmatprep.subr.mxu0 0.0
    %474 = vmatpush1.msra.mxu0 0.0
    %475 = vmatprep.subr.mxu0 0.0
    %476 = vmatpush1.msra.mxu0 0.0
    %477 = vmatprep.subr.mxu0 0.0
    %478 = vmatpush1.msra.mxu0 0.0
    %479 = vmatprep.subr.mxu0 0.0
    %480 = vmatpush1.msra.mxu0 0.0
    %481 = vmatprep.subr.mxu0 0.0
    %482 = vmatpush1.msra.mxu0 0.0
    %483 = vmatprep.subr.mxu0 0.0
    %484 = vmatpush1.msra.mxu0 0.0
    %485 = vmatprep.subr.mxu0 0.0
    %486 = vmatpush1.msra.mxu0 0.0
    %487 = vmatprep.mubr.f32.mxu0 0.0
    %488 = vmatmul.mubr.f32.gmra.mrb[0].mxu0 %v421
    %v489 = vpop.f32.mrb[0].mxu0
    %v490 = vadd.f32 0.0, %v489
    %v491 = vpop.f32.mrb[0].mxu0
    %492 = vdwg.mxu0
    %v493 = vadd.f32 %v174, %v490
    %v494 = vxor.u32 %v493, 2147483648
    %v495 = vmul.f32 %v494, 1.442695
    %v496 = vpow.pop %v495
    %v497 = vadd.f32 %v496, 1.0
    %v498 = vrcp.pop %v497
    %v499 = vmul.f32 1.0, %v498
    %v500 = vadd.f32 %v490, %v294
    %502 = vrot.lane.b32.xlu0 %v500, 64
    %v503 = vpop.permute.xlu0 %502
    %v505 = vmul.f32 %v499, %v503
    %507 = vrot.lane.b32.xlu0 %v505, 64
    %v508 = vpop.permute.xlu0 %507
    %v510 = vadd.f32 %v174, %v508
    %v511 = vtanh.pop %v510
    %v512 = vsub.f32 1.0, %v499
    %514 = vrot.lane.b32.xlu0 %v511, 96
    %v515 = vpop.permute.xlu0 %514
    %v517 = vmul.f32 %v512, %v515
    %v518 = vmul.f32 %v499, %v417
    %v519 = vadd.f32 %v517, %v518
    %521 = vrot.lane.b32.xlu0 %v519, 96
    %v522 = vpop.permute.xlu0 %521
    %v523 = vsel %vm212, %v522, 0
    %525 = vmatprep.subr.mxu0 0.0
    %526 = vmatpush1.msra.mxu0 %v202
    %527 = vmatprep.subr.mxu0 0.0
    %528 = vmatpush1.msra.mxu0 %v203
    %529 = vmatprep.subr.mxu0 0.0
    %530 = vmatpush1.msra.mxu0 %v204
    %531 = vmatprep.subr.mxu0 0.0
    %532 = vmatpush1.msra.mxu0 %v205
    %533 = vmatprep.subr.mxu0 0.0
    %534 = vmatpush1.msra.mxu0 0.0
    %535 = vmatprep.subr.mxu0 0.0
    %536 = vmatpush1.msra.mxu0 0.0
    %537 = vmatprep.subr.mxu0 0.0
    %538 = vmatpush1.msra.mxu0 0.0
    %539 = vmatprep.subr.mxu0 0.0
    %540 = vmatpush1.msra.mxu0 0.0
    %541 = vmatprep.subr.mxu0 0.0
    %542 = vmatpush1.msra.mxu0 0.0
    %543 = vmatprep.subr.mxu0 0.0
    %544 = vmatpush1.msra.mxu0 0.0
    %545 = vmatprep.subr.mxu0 0.0
    %546 = vmatpush1.msra.mxu0 0.0
    %547 = vmatprep.subr.mxu0 0.0
    %548 = vmatpush1.msra.mxu0 0.0
    %549 = vmatprep.subr.mxu0 0.0
    %550 = vmatpush1.msra.mxu0 0.0
    %551 = vmatprep.subr.mxu0 0.0
    %552 = vmatpush1.msra.mxu0 0.0
    %553 = vmatprep.subr.mxu0 0.0
    %554 = vmatpush1.msra.mxu0 0.0
    %555 = vmatprep.subr.mxu0 0.0
    %556 = vmatpush1.msra.mxu0 0.0
    %557 = vmatprep.subr.mxu0 0.0
    %558 = vmatpush1.msra.mxu0 0.0
    %559 = vmatprep.subr.mxu0 0.0
    %560 = vmatpush1.msra.mxu0 0.0
    %561 = vmatprep.subr.mxu0 0.0
    %562 = vmatpush1.msra.mxu0 0.0
    %563 = vmatprep.subr.mxu0 0.0
    %564 = vmatpush1.msra.mxu0 0.0
    %565 = vmatprep.subr.mxu0 0.0
    %566 = vmatpush1.msra.mxu0 0.0
    %567 = vmatprep.subr.mxu0 0.0
    %568 = vmatpush1.msra.mxu0 0.0
    %569 = vmatprep.subr.mxu0 0.0
    %570 = vmatpush1.msra.mxu0 0.0
    %571 = vmatprep.subr.mxu0 0.0
    %572 = vmatpush1.msra.mxu0 0.0
    %573 = vmatprep.subr.mxu0 0.0
    %574 = vmatpush1.msra.mxu0 0.0
    %575 = vmatprep.subr.mxu0 0.0
    %576 = vmatpush1.msra.mxu0 0.0
    %577 = vmatprep.subr.mxu0 0.0
    %578 = vmatpush1.msra.mxu0 0.0
    %579 = vmatprep.subr.mxu0 0.0
    %580 = vmatpush1.msra.mxu0 0.0
    %581 = vmatprep.subr.mxu0 0.0
    %582 = vmatpush1.msra.mxu0 0.0
    %583 = vmatprep.subr.mxu0 0.0
    %584 = vmatpush1.msra.mxu0 0.0
    %585 = vmatprep.subr.mxu0 0.0
    %586 = vmatpush1.msra.mxu0 0.0
    %587 = vmatprep.subr.mxu0 0.0
    %588 = vmatpush1.msra.mxu0 0.0
    %589 = vmatprep.mubr.f32.mxu0 0.0
    %590 = vmatmul.mubr.f32.gmra.mrb[0].mxu0 %v523
    %v591 = vpop.f32.mrb[0].mxu0
    %v592 = vadd.f32 0.0, %v591
    %v593 = vpop.f32.mrb[0].mxu0
    %594 = vdwg.mxu0
    %v595 = vadd.f32 %v179, %v592
    %v596 = vxor.u32 %v595, 2147483648
    %v597 = vmul.f32 %v596, 1.442695
    %v598 = vpow.pop %v597
    %v599 = vadd.f32 %v598, 1.0
    %v600 = vrcp.pop %v599
    %v601 = vmul.f32 1.0, %v600
    %v602 = vadd.f32 %v592, %v294
    %604 = vrot.lane.b32.xlu0 %v602, 64
    %v605 = vpop.permute.xlu0 %604
    %v607 = vmul.f32 %v601, %v605
    %609 = vrot.lane.b32.xlu0 %v607, 64
    %v610 = vpop.permute.xlu0 %609
    %v612 = vadd.f32 %v179, %v610
    %v613 = vtanh.pop %v612
    %v614 = vsub.f32 1.0, %v601
    %616 = vrot.lane.b32.xlu0 %v613, 96
    %v617 = vpop.permute.xlu0 %616
    %v619 = vmul.f32 %v614, %v617
    %v620 = vmul.f32 %v601, %v519
    %v621 = vadd.f32 %v619, %v620
    %623 = vrot.lane.b32.xlu0 %v621, 96
    %v624 = vpop.permute.xlu0 %623
    %v625 = vsel %vm212, %v624, 0
    %627 = vmatprep.subr.mxu0 0.0
    %628 = vmatpush1.msra.mxu0 %v202
    %629 = vmatprep.subr.mxu0 0.0
    %630 = vmatpush1.msra.mxu0 %v203
    %631 = vmatprep.subr.mxu0 0.0
    %632 = vmatpush1.msra.mxu0 %v204
    %633 = vmatprep.subr.mxu0 0.0
    %634 = vmatpush1.msra.mxu0 %v205
    %635 = vmatprep.subr.mxu0 0.0
    %636 = vmatpush1.msra.mxu0 0.0
    %637 = vmatprep.subr.mxu0 0.0
    %638 = vmatpush1.msra.mxu0 0.0
    %639 = vmatprep.subr.mxu0 0.0
    %640 = vmatpush1.msra.mxu0 0.0
    %641 = vmatprep.subr.mxu0 0.0
    %642 = vmatpush1.msra.mxu0 0.0
    %643 = vmatprep.subr.mxu0 0.0
    %644 = vmatpush1.msra.mxu0 0.0
    %645 = vmatprep.subr.mxu0 0.0
    %646 = vmatpush1.msra.mxu0 0.0
    %647 = vmatprep.subr.mxu0 0.0
    %648 = vmatpush1.msra.mxu0 0.0
    %649 = vmatprep.subr.mxu0 0.0
    %650 = vmatpush1.msra.mxu0 0.0
    %651 = vmatprep.subr.mxu0 0.0
    %652 = vmatpush1.msra.mxu0 0.0
    %653 = vmatprep.subr.mxu0 0.0
    %654 = vmatpush1.msra.mxu0 0.0
    %655 = vmatprep.subr.mxu0 0.0
    %656 = vmatpush1.msra.mxu0 0.0
    %657 = vmatprep.subr.mxu0 0.0
    %658 = vmatpush1.msra.mxu0 0.0
    %659 = vmatprep.subr.mxu0 0.0
    %660 = vmatpush1.msra.mxu0 0.0
    %661 = vmatprep.subr.mxu0 0.0
    %662 = vmatpush1.msra.mxu0 0.0
    %663 = vmatprep.subr.mxu0 0.0
    %664 = vmatpush1.msra.mxu0 0.0
    %665 = vmatprep.subr.mxu0 0.0
    %666 = vmatpush1.msra.mxu0 0.0
    %667 = vmatprep.subr.mxu0 0.0
    %668 = vmatpush1.msra.mxu0 0.0
    %669 = vmatprep.subr.mxu0 0.0
    %670 = vmatpush1.msra.mxu0 0.0
    %671 = vmatprep.subr.mxu0 0.0
    %672 = vmatpush1.msra.mxu0 0.0
    %673 = vmatprep.subr.mxu0 0.0
    %674 = vmatpush1.msra.mxu0 0.0
    %675 = vmatprep.subr.mxu0 0.0
    %676 = vmatpush1.msra.mxu0 0.0
    %677 = vmatprep.subr.mxu0 0.0
    %678 = vmatpush1.msra.mxu0 0.0
    %679 = vmatprep.subr.mxu0 0.0
    %680 = vmatpush1.msra.mxu0 0.0
    %681 = vmatprep.subr.mxu0 0.0
    %682 = vmatpush1.msra.mxu0 0.0
    %683 = vmatprep.subr.mxu0 0.0
    %684 = vmatpush1.msra.mxu0 0.0
    %685 = vmatprep.subr.mxu0 0.0
    %686 = vmatpush1.msra.mxu0 0.0
    %687 = vmatprep.subr.mxu0 0.0
    %688 = vmatpush1.msra.mxu0 0.0
    %689 = vmatprep.subr.mxu0 0.0
    %690 = vmatpush1.msra.mxu0 0.0
    %691 = vmatprep.mubr.f32.mxu0 0.0
    %692 = vmatmul.mubr.f32.gmra.mrb[0].mxu0 %v625
    %v693 = vpop.f32.mrb[0].mxu0
    %v694 = vadd.f32 0.0, %v693
    %v695 = vpop.f32.mrb[0].mxu0
    %696 = vdwg.mxu0
    %v697 = vadd.f32 %v184, %v694
    %v698 = vxor.u32 %v697, 2147483648
    %v699 = vmul.f32 %v698, 1.442695
    %v700 = vpow.pop %v699
    %v701 = vadd.f32 %v700, 1.0
    %v702 = vrcp.pop %v701
    %v703 = vmul.f32 1.0, %v702
    %v704 = vadd.f32 %v694, %v294
    %706 = vrot.lane.b32.xlu0 %v704, 64
    %v707 = vpop.permute.xlu0 %706
    %v709 = vmul.f32 %v703, %v707
    %711 = vrot.lane.b32.xlu0 %v709, 64
    %v712 = vpop.permute.xlu0 %711
    %v714 = vadd.f32 %v184, %v712
    %v715 = vtanh.pop %v714
    %v716 = vsub.f32 1.0, %v703
    %718 = vrot.lane.b32.xlu0 %v715, 96
    %v719 = vpop.permute.xlu0 %718
    %v721 = vmul.f32 %v716, %v719
    %v722 = vmul.f32 %v703, %v621
    %v723 = vadd.f32 %v721, %v722
    %725 = vrot.lane.b32.xlu0 %v723, 96
    %v726 = vpop.permute.xlu0 %725
    %v727 = vsel %vm212, %v726, 0
    %729 = vmatprep.subr.mxu0 0.0
    %730 = vmatpush1.msra.mxu0 %v202
    %731 = vmatprep.subr.mxu0 0.0
    %732 = vmatpush1.msra.mxu0 %v203
    %733 = vmatprep.subr.mxu0 0.0
    %734 = vmatpush1.msra.mxu0 %v204
    %735 = vmatprep.subr.mxu0 0.0
    %736 = vmatpush1.msra.mxu0 %v205
    %737 = vmatprep.subr.mxu0 0.0
    %738 = vmatpush1.msra.mxu0 0.0
    %739 = vmatprep.subr.mxu0 0.0
    %740 = vmatpush1.msra.mxu0 0.0
    %741 = vmatprep.subr.mxu0 0.0
    %742 = vmatpush1.msra.mxu0 0.0
    %743 = vmatprep.subr.mxu0 0.0
    %744 = vmatpush1.msra.mxu0 0.0
    %745 = vmatprep.subr.mxu0 0.0
    %746 = vmatpush1.msra.mxu0 0.0
    %747 = vmatprep.subr.mxu0 0.0
    %748 = vmatpush1.msra.mxu0 0.0
    %749 = vmatprep.subr.mxu0 0.0
    %750 = vmatpush1.msra.mxu0 0.0
    %751 = vmatprep.subr.mxu0 0.0
    %752 = vmatpush1.msra.mxu0 0.0
    %753 = vmatprep.subr.mxu0 0.0
    %754 = vmatpush1.msra.mxu0 0.0
    %755 = vmatprep.subr.mxu0 0.0
    %756 = vmatpush1.msra.mxu0 0.0
    %757 = vmatprep.subr.mxu0 0.0
    %758 = vmatpush1.msra.mxu0 0.0
    %759 = vmatprep.subr.mxu0 0.0
    %760 = vmatpush1.msra.mxu0 0.0
    %761 = vmatprep.subr.mxu0 0.0
    %762 = vmatpush1.msra.mxu0 0.0
    %763 = vmatprep.subr.mxu0 0.0
    %764 = vmatpush1.msra.mxu0 0.0
    %765 = vmatprep.subr.mxu0 0.0
    %766 = vmatpush1.msra.mxu0 0.0
    %767 = vmatprep.subr.mxu0 0.0
    %768 = vmatpush1.msra.mxu0 0.0
    %769 = vmatprep.subr.mxu0 0.0
    %770 = vmatpush1.msra.mxu0 0.0
    %771 = vmatprep.subr.mxu0 0.0
    %772 = vmatpush1.msra.mxu0 0.0
    %773 = vmatprep.subr.mxu0 0.0
    %774 = vmatpush1.msra.mxu0 0.0
    %775 = vmatprep.subr.mxu0 0.0
    %776 = vmatpush1.msra.mxu0 0.0
    %777 = vmatprep.subr.mxu0 0.0
    %778 = vmatpush1.msra.mxu0 0.0
    %779 = vmatprep.subr.mxu0 0.0
    %780 = vmatpush1.msra.mxu0 0.0
    %781 = vmatprep.subr.mxu0 0.0
    %782 = vmatpush1.msra.mxu0 0.0
    %783 = vmatprep.subr.mxu0 0.0
    %784 = vmatpush1.msra.mxu0 0.0
    %785 = vmatprep.subr.mxu0 0.0
    %786 = vmatpush1.msra.mxu0 0.0
    %787 = vmatprep.subr.mxu0 0.0
    %788 = vmatpush1.msra.mxu0 0.0
    %789 = vmatprep.subr.mxu0 0.0
    %790 = vmatpush1.msra.mxu0 0.0
    %791 = vmatprep.subr.mxu0 0.0
    %792 = vmatpush1.msra.mxu0 0.0
    %793 = vmatprep.mubr.f32.mxu0 0.0
    %794 = vmatmul.mubr.f32.gmra.mrb[0].mxu0 %v727
    %v795 = vpop.f32.mrb[0].mxu0
    %v796 = vadd.f32 0.0, %v795
    %v797 = vpop.f32.mrb[0].mxu0
    %798 = vdwg.mxu0
    %v799 = vadd.f32 %v189, %v796
    %v800 = vxor.u32 %v799, 2147483648
    %v801 = vmul.f32 %v800, 1.442695
    %v802 = vpow.pop %v801
    %v803 = vadd.f32 %v802, 1.0
    %v804 = vrcp.pop %v803
    %v805 = vmul.f32 1.0, %v804
    %v806 = vadd.f32 %v796, %v294
    %808 = vrot.lane.b32.xlu0 %v806, 64
    %v809 = vpop.permute.xlu0 %808
    %v811 = vmul.f32 %v805, %v809
    %813 = vrot.lane.b32.xlu0 %v811, 64
    %v814 = vpop.permute.xlu0 %813
    %v816 = vadd.f32 %v189, %v814
    %v817 = vtanh.pop %v816
    %v818 = vsub.f32 1.0, %v805
    %820 = vrot.lane.b32.xlu0 %v817, 96
    %v821 = vpop.permute.xlu0 %820
    %v823 = vmul.f32 %v818, %v821
    %v824 = vmul.f32 %v805, %v723
    %v825 = vadd.f32 %v823, %v824
    %827 = vrot.lane.b32.xlu0 %v825, 96
    %v828 = vpop.permute.xlu0 %827
    %v829 = vsel %vm212, %v828, 0
    %831 = vmatprep.subr.mxu0 0.0
    %832 = vmatpush1.msra.mxu0 %v202
    %833 = vmatprep.subr.mxu0 0.0
    %834 = vmatpush1.msra.mxu0 %v203
    %835 = vmatprep.subr.mxu0 0.0
    %836 = vmatpush1.msra.mxu0 %v204
    %837 = vmatprep.subr.mxu0 0.0
    %838 = vmatpush1.msra.mxu0 %v205
    %839 = vmatprep.subr.mxu0 0.0
    %840 = vmatpush1.msra.mxu0 0.0
    %841 = vmatprep.subr.mxu0 0.0
    %842 = vmatpush1.msra.mxu0 0.0
    %843 = vmatprep.subr.mxu0 0.0
    %844 = vmatpush1.msra.mxu0 0.0
    %845 = vmatprep.subr.mxu0 0.0
    %846 = vmatpush1.msra.mxu0 0.0
    %847 = vmatprep.subr.mxu0 0.0
    %848 = vmatpush1.msra.mxu0 0.0
    %849 = vmatprep.subr.mxu0 0.0
    %850 = vmatpush1.msra.mxu0 0.0
    %851 = vmatprep.subr.mxu0 0.0
    %852 = vmatpush1.msra.mxu0 0.0
    %853 = vmatprep.subr.mxu0 0.0
    %854 = vmatpush1.msra.mxu0 0.0
    %855 = vmatprep.subr.mxu0 0.0
    %856 = vmatpush1.msra.mxu0 0.0
    %857 = vmatprep.subr.mxu0 0.0
    %858 = vmatpush1.msra.mxu0 0.0
    %859 = vmatprep.subr.mxu0 0.0
    %860 = vmatpush1.msra.mxu0 0.0
    %861 = vmatprep.subr.mxu0 0.0
    %862 = vmatpush1.msra.mxu0 0.0
    %863 = vmatprep.subr.mxu0 0.0
    %864 = vmatpush1.msra.mxu0 0.0
    %865 = vmatprep.subr.mxu0 0.0
    %866 = vmatpush1.msra.mxu0 0.0
    %867 = vmatprep.subr.mxu0 0.0
    %868 = vmatpush1.msra.mxu0 0.0
    %869 = vmatprep.subr.mxu0 0.0
    %870 = vmatpush1.msra.mxu0 0.0
    %871 = vmatprep.subr.mxu0 0.0
    %872 = vmatpush1.msra.mxu0 0.0
    %873 = vmatprep.subr.mxu0 0.0
    %874 = vmatpush1.msra.mxu0 0.0
    %875 = vmatprep.subr.mxu0 0.0
    %876 = vmatpush1.msra.mxu0 0.0
    %877 = vmatprep.subr.mxu0 0.0
    %878 = vmatpush1.msra.mxu0 0.0
    %879 = vmatprep.subr.mxu0 0.0
    %880 = vmatpush1.msra.mxu0 0.0
    %881 = vmatprep.subr.mxu0 0.0
    %882 = vmatpush1.msra.mxu0 0.0
    %883 = vmatprep.subr.mxu0 0.0
    %884 = vmatpush1.msra.mxu0 0.0
    %885 = vmatprep.subr.mxu0 0.0
    %886 = vmatpush1.msra.mxu0 0.0
    %887 = vmatprep.subr.mxu0 0.0
    %888 = vmatpush1.msra.mxu0 0.0
    %889 = vmatprep.subr.mxu0 0.0
    %890 = vmatpush1.msra.mxu0 0.0
    %891 = vmatprep.subr.mxu0 0.0
    %892 = vmatpush1.msra.mxu0 0.0
    %893 = vmatprep.subr.mxu0 0.0
    %894 = vmatpush1.msra.mxu0 0.0
    %895 = vmatprep.mubr.f32.mxu0 0.0
    %896 = vmatmul.mubr.f32.gmra.mrb[0].mxu0 %v829
    %v897 = vpop.f32.mrb[0].mxu0
    %v898 = vadd.f32 0.0, %v897
    %v899 = vpop.f32.mrb[0].mxu0
    %900 = vdwg.mxu0
    %v901 = vadd.f32 %v194, %v898
    %v902 = vxor.u32 %v901, 2147483648
    %v903 = vmul.f32 %v902, 1.442695
    %v904 = vpow.pop %v903
    %v905 = vadd.f32 %v904, 1.0
    %v906 = vrcp.pop %v905
    %v907 = vmul.f32 1.0, %v906
    %v908 = vadd.f32 %v898, %v294
    %910 = vrot.lane.b32.xlu0 %v908, 64
    %v911 = vpop.permute.xlu0 %910
    %v913 = vmul.f32 %v907, %v911
    %915 = vrot.lane.b32.xlu0 %v913, 64
    %v916 = vpop.permute.xlu0 %915
    %v918 = vadd.f32 %v194, %v916
    %v919 = vtanh.pop %v918
    %v920 = vsub.f32 1.0, %v907
    %922 = vrot.lane.b32.xlu0 %v919, 96
    %v923 = vpop.permute.xlu0 %922
    %v925 = vmul.f32 %v920, %v923
    %v926 = vmul.f32 %v907, %v825
    %v927 = vadd.f32 %v925, %v926
    %929 = vrot.lane.b32.xlu0 %v927, 96
    %v930 = vpop.permute.xlu0 %929
    %v931 = vsel %vm212, %v930, 0
    %933 = vmatprep.subr.mxu0 0.0
    %934 = vmatpush1.msra.mxu0 %v202
    %935 = vmatprep.subr.mxu0 0.0
    %936 = vmatpush1.msra.mxu0 %v203
    %937 = vmatprep.subr.mxu0 0.0
    %938 = vmatpush1.msra.mxu0 %v204
    %939 = vmatprep.subr.mxu0 0.0
    %940 = vmatpush1.msra.mxu0 %v205
    %941 = vmatprep.subr.mxu0 0.0
    %942 = vmatpush1.msra.mxu0 0.0
    %943 = vmatprep.subr.mxu0 0.0
    %944 = vmatpush1.msra.mxu0 0.0
    %945 = vmatprep.subr.mxu0 0.0
    %946 = vmatpush1.msra.mxu0 0.0
    %947 = vmatprep.subr.mxu0 0.0
    %948 = vmatpush1.msra.mxu0 0.0
    %949 = vmatprep.subr.mxu0 0.0
    %950 = vmatpush1.msra.mxu0 0.0
    %951 = vmatprep.subr.mxu0 0.0
    %952 = vmatpush1.msra.mxu0 0.0
    %953 = vmatprep.subr.mxu0 0.0
    %954 = vmatpush1.msra.mxu0 0.0
    %955 = vmatprep.subr.mxu0 0.0
    %956 = vmatpush1.msra.mxu0 0.0
    %957 = vmatprep.subr.mxu0 0.0
    %958 = vmatpush1.msra.mxu0 0.0
    %959 = vmatprep.subr.mxu0 0.0
    %960 = vmatpush1.msra.mxu0 0.0
    %961 = vmatprep.subr.mxu0 0.0
    %962 = vmatpush1.msra.mxu0 0.0
    %963 = vmatprep.subr.mxu0 0.0
    %964 = vmatpush1.msra.mxu0 0.0
    %965 = vmatprep.subr.mxu0 0.0
    %966 = vmatpush1.msra.mxu0 0.0
    %967 = vmatprep.subr.mxu0 0.0
    %968 = vmatpush1.msra.mxu0 0.0
    %969 = vmatprep.subr.mxu0 0.0
    %970 = vmatpush1.msra.mxu0 0.0
    %971 = vmatprep.subr.mxu0 0.0
    %972 = vmatpush1.msra.mxu0 0.0
    %973 = vmatprep.subr.mxu0 0.0
    %974 = vmatpush1.msra.mxu0 0.0
    %975 = vmatprep.subr.mxu0 0.0
    %976 = vmatpush1.msra.mxu0 0.0
    %977 = vmatprep.subr.mxu0 0.0
    %978 = vmatpush1.msra.mxu0 0.0
    %979 = vmatprep.subr.mxu0 0.0
    %980 = vmatpush1.msra.mxu0 0.0
    %981 = vmatprep.subr.mxu0 0.0
    %982 = vmatpush1.msra.mxu0 0.0
    %983 = vmatprep.subr.mxu0 0.0
    %984 = vmatpush1.msra.mxu0 0.0
    %985 = vmatprep.subr.mxu0 0.0
    %986 = vmatpush1.msra.mxu0 0.0
    %987 = vmatprep.subr.mxu0 0.0
    %988 = vmatpush1.msra.mxu0 0.0
    %989 = vmatprep.subr.mxu0 0.0
    %990 = vmatpush1.msra.mxu0 0.0
    %991 = vmatprep.subr.mxu0 0.0
    %992 = vmatpush1.msra.mxu0 0.0
    %993 = vmatprep.subr.mxu0 0.0
    %994 = vmatpush1.msra.mxu0 0.0
    %995 = vmatprep.subr.mxu0 0.0
    %996 = vmatpush1.msra.mxu0 0.0
    %997 = vmatprep.mubr.f32.mxu0 0.0
    %998 = vmatmul.mubr.f32.gmra.mrb[0].mxu0 %v931
    %v999 = vpop.f32.mrb[0].mxu0
    %v1000 = vadd.f32 0.0, %v999
    %v1001 = vpop.f32.mrb[0].mxu0
    %1002 = vdwg.mxu0
    %v1003 = vadd.f32 %v199, %v1000
    %v1004 = vxor.u32 %v1003, 2147483648
    %v1005 = vmul.f32 %v1004, 1.442695
    %v1006 = vpow.pop %v1005
    %v1007 = vadd.f32 %v1006, 1.0
    %v1008 = vrcp.pop %v1007
    %v1009 = vmul.f32 1.0, %v1008
    %v1010 = vadd.f32 %v1000, %v294
    %1012 = vrot.lane.b32.xlu0 %v1010, 64
    %v1013 = vpop.permute.xlu0 %1012
    %v1015 = vmul.f32 %v1009, %v1013
    %1017 = vrot.lane.b32.xlu0 %v1015, 64
    %v1018 = vpop.permute.xlu0 %1017
    %v1020 = vadd.f32 %v199, %v1018
    %v1021 = vtanh.pop %v1020
    %v1022 = vsub.f32 1.0, %v1009
    %1024 = vrot.lane.b32.xlu0 %v1021, 96
    %v1025 = vpop.permute.xlu0 %1024
    %v1027 = vmul.f32 %v1022, %v1025
    %v1028 = vmul.f32 %v1009, %v927
    %v1029 = vadd.f32 %v1027, %v1028
    %v1030 = vld [vmem:[#allocation2] sm:$0xff]
    %v1031 = vld [vmem:[#allocation2 + $0x8] sm:$0xff]
    %v1032 = vld [vmem:[#allocation2 + $0x10] sm:$0xff]
    %v1033 = vld [vmem:[#allocation2 + $0x18] sm:$0xff]
    %v1034 = vld [vmem:[#allocation2 + $0x20] sm:$0xff]
    %v1035 = vld [vmem:[#allocation2 + $0x28] sm:$0xff]
    %v1036 = vld [vmem:[#allocation2 + $0x30] sm:$0xff]
    %v1037 = vld [vmem:[#allocation2 + $0x38] sm:$0xff]
    %v1038 = vld [vmem:[#allocation2 + $0x40] sm:$0xff]
    %v1039 = vld [vmem:[#allocation2 + $0x48] sm:$0xff]
    %v1040 = vld [vmem:[#allocation2 + $0x50] sm:$0xff]
    %v1041 = vld [vmem:[#allocation2 + $0x58] sm:$0xff]
    %v1042 = vld [vmem:[#allocation2 + $0x60] sm:$0xff]
    %v1043 = vld [vmem:[#allocation2 + $0x68] sm:$0xff]
    %v1044 = vld [vmem:[#allocation2 + $0x70] sm:$0xff]
    %v1045 = vld [vmem:[#allocation2 + $0x78] sm:$0xff]
    %v1046 = vld [vmem:[#allocation2 + $0x80] sm:$0xff]
    %v1047 = vld [vmem:[#allocation2 + $0x88] sm:$0xff]
    %v1048 = vld [vmem:[#allocation2 + $0x90] sm:$0xff]
    %v1049 = vld [vmem:[#allocation2 + $0x98] sm:$0xff]
    %v1050 = vld [vmem:[#allocation2 + $0xa0] sm:$0xff]
    %v1051 = vld [vmem:[#allocation2 + $0xa8] sm:$0xff]
    %v1052 = vld [vmem:[#allocation2 + $0xb0] sm:$0xff]
    %v1053 = vld [vmem:[#allocation2 + $0xb8] sm:$0xff]
    %v1054 = vld [vmem:[#allocation2 + $0xc0] sm:$0xff]
    %v1055 = vld [vmem:[#allocation2 + $0xc8] sm:$0xff]
    %v1056 = vld [vmem:[#allocation2 + $0xd0] sm:$0xff]
    %v1057 = vld [vmem:[#allocation2 + $0xd8] sm:$0xff]
    %v1058 = vld [vmem:[#allocation2 + $0xe0] sm:$0xff]
    %v1059 = vld [vmem:[#allocation2 + $0xe8] sm:$0xff]
    %v1060 = vld [vmem:[#allocation2 + $0xf0] sm:$0xff]
    %v1061 = vld [vmem:[#allocation2 + $0xf8] sm:$0xff]
    %v1062 = vld [vmem:[#allocation2 + $0x100] sm:$0xff]
    %v1063 = vld [vmem:[#allocation2 + $0x108] sm:$0xff]
    %v1064 = vld [vmem:[#allocation2 + $0x110] sm:$0xff]
    %v1065 = vld [vmem:[#allocation2 + $0x118] sm:$0xff]
    %v1066 = vld [vmem:[%s6] sm:$0xff]
    %v1067 = vld [vmem:[%s6 + $0x8] sm:$0x1]
    %v1070 = vlaneseq
    %v1071 = vshrl.u32 %v1070, 7
    %v1072 = vsub.s32 0, %v1071
    %v1073 = vrot.slane %v1066, %v1072
    %v1074 = vlaneseq
    %v1075 = vshrl.u32 %v1074, 7
    %v1076 = vsub.s32 1, %v1075
    %v1077 = vrot.slane %v1066, %v1076
    %v1078 = vlaneseq
    %v1079 = vshrl.u32 %v1078, 7
    %v1080 = vsub.s32 2, %v1079
    %v1081 = vrot.slane %v1066, %v1080
    %v1082 = vlaneseq
    %v1083 = vshrl.u32 %v1082, 7
    %v1084 = vsub.s32 3, %v1083
    %v1085 = vrot.slane %v1066, %v1084
    %v1086 = vlaneseq
    %v1087 = vshrl.u32 %v1086, 7
    %v1088 = vsub.s32 4, %v1087
    %v1089 = vrot.slane %v1066, %v1088
    %v1090 = vlaneseq
    %v1091 = vshrl.u32 %v1090, 7
    %v1092 = vsub.s32 5, %v1091
    %v1093 = vrot.slane %v1066, %v1092
    %v1094 = vlaneseq
    %v1095 = vshrl.u32 %v1094, 7
    %v1096 = vsub.s32 6, %v1095
    %v1097 = vrot.slane %v1066, %v1096
    %v1098 = vlaneseq
    %v1099 = vshrl.u32 %v1098, 7
    %v1100 = vsub.s32 7, %v1099
    %v1101 = vrot.slane %v1066, %v1100
    %v1102 = vlaneseq
    %v1103 = vshrl.u32 %v1102, 7
    %v1104 = vsub.s32 0, %v1103
    %v1105 = vrot.slane %v1067, %v1104
    %1116 = vrot.lane.b32.xlu0 %v1029, 96
    %v1117 = vpop.permute.xlu0 %1116
    %v1118 = vsel %vm212, %v1117, 0
    %1120 = vmatprep.subr.mxu0 %v1031
    %1121 = vmatpush1.msra.mxu0 %v1030
    %1122 = vmatprep.subr.mxu0 %v1040
    %1123 = vmatpush1.msra.mxu0 %v1039
    %1124 = vmatprep.subr.mxu0 %v1049
    %1125 = vmatpush1.msra.mxu0 %v1048
    %1126 = vmatprep.subr.mxu0 %v1058
    %1127 = vmatpush1.msra.mxu0 %v1057
    %1128 = vmatprep.subr.mxu0 0.0
    %1129 = vmatpush1.msra.mxu0 0.0
    %1130 = vmatprep.subr.mxu0 0.0
    %1131 = vmatpush1.msra.mxu0 0.0
    %1132 = vmatprep.subr.mxu0 0.0
    %1133 = vmatpush1.msra.mxu0 0.0
    %1134 = vmatprep.subr.mxu0 0.0
    %1135 = vmatpush1.msra.mxu0 0.0
    %1136 = vmatprep.subr.mxu0 0.0
    %1137 = vmatpush1.msra.mxu0 0.0
    %1138 = vmatprep.subr.mxu0 0.0
    %1139 = vmatpush1.msra.mxu0 0.0
    %1140 = vmatprep.subr.mxu0 0.0
    %1141 = vmatpush1.msra.mxu0 0.0
    %1142 = vmatprep.subr.mxu0 0.0
    %1143 = vmatpush1.msra.mxu0 0.0
    %1144 = vmatprep.subr.mxu0 0.0
    %1145 = vmatpush1.msra.mxu0 0.0
    %1146 = vmatprep.subr.mxu0 0.0
    %1147 = vmatpush1.msra.mxu0 0.0
    %1148 = vmatprep.subr.mxu0 0.0
    %1149 = vmatpush1.msra.mxu0 0.0
    %1150 = vmatprep.subr.mxu0 0.0
    %1151 = vmatpush1.msra.mxu0 0.0
    %1152 = vmatprep.subr.mxu0 0.0
    %1153 = vmatpush1.msra.mxu0 0.0
    %1154 = vmatprep.subr.mxu0 0.0
    %1155 = vmatpush1.msra.mxu0 0.0
    %1156 = vmatprep.subr.mxu0 0.0
    %1157 = vmatpush1.msra.mxu0 0.0
    %1158 = vmatprep.subr.mxu0 0.0
    %1159 = vmatpush1.msra.mxu0 0.0
    %1160 = vmatprep.subr.mxu0 0.0
    %1161 = vmatpush1.msra.mxu0 0.0
    %1162 = vmatprep.subr.mxu0 0.0
    %1163 = vmatpush1.msra.mxu0 0.0
    %1164 = vmatprep.subr.mxu0 0.0
    %1165 = vmatpush1.msra.mxu0 0.0
    %1166 = vmatprep.subr.mxu0 0.0
    %1167 = vmatpush1.msra.mxu0 0.0
    %1168 = vmatprep.subr.mxu0 0.0
    %1169 = vmatpush1.msra.mxu0 0.0
    %1170 = vmatprep.subr.mxu0 0.0
    %1171 = vmatpush1.msra.mxu0 0.0
    %1172 = vmatprep.subr.mxu0 0.0
    %1173 = vmatpush1.msra.mxu0 0.0
    %1174 = vmatprep.subr.mxu0 0.0
    %1175 = vmatpush1.msra.mxu0 0.0
    %1176 = vmatprep.subr.mxu0 0.0
    %1177 = vmatpush1.msra.mxu0 0.0
    %1178 = vmatprep.subr.mxu0 0.0
    %1179 = vmatpush1.msra.mxu0 0.0
    %1180 = vmatprep.subr.mxu0 0.0
    %1181 = vmatpush1.msra.mxu0 0.0
    %1182 = vmatprep.subr.mxu0 0.0
    %1183 = vmatpush1.msra.mxu0 0.0
    %1184 = vmatprep.mubr.f32.mxu0 0.0
    %1185 = vmatmul.mubr.f32.gmra.mrb[0].mxu0 %v1118
    %v1186 = vpop.f32.mrb[0].mxu0
    %v1187 = vadd.f32 %v1073, %v1186
    %v1188 = vpop.f32.mrb[0].mxu0
    %v1189 = vadd.f32 %v1077, %v1188
    %1190 = vdwg.mxu0
    %1191 = vmatprep.subr.mxu0 %v1033
    %1192 = vmatpush1.msra.mxu0 %v1032
    %1193 = vmatprep.subr.mxu0 %v1042
    %1194 = vmatpush1.msra.mxu0 %v1041
    %1195 = vmatprep.subr.mxu0 %v1051
    %1196 = vmatpush1.msra.mxu0 %v1050
    %1197 = vmatprep.subr.mxu0 %v1060
    %1198 = vmatpush1.msra.mxu0 %v1059
    %1199 = vmatprep.subr.mxu0 0.0
    %1200 = vmatpush1.msra.mxu0 0.0
    %1201 = vmatprep.subr.mxu0 0.0
    %1202 = vmatpush1.msra.mxu0 0.0
    %1203 = vmatprep.subr.mxu0 0.0
    %1204 = vmatpush1.msra.mxu0 0.0
    %1205 = vmatprep.subr.mxu0 0.0
    %1206 = vmatpush1.msra.mxu0 0.0
    %1207 = vmatprep.subr.mxu0 0.0
    %1208 = vmatpush1.msra.mxu0 0.0
    %1209 = vmatprep.subr.mxu0 0.0
    %1210 = vmatpush1.msra.mxu0 0.0
    %1211 = vmatprep.subr.mxu0 0.0
    %1212 = vmatpush1.msra.mxu0 0.0
    %1213 = vmatprep.subr.mxu0 0.0
    %1214 = vmatpush1.msra.mxu0 0.0
    %1215 = vmatprep.subr.mxu0 0.0
    %1216 = vmatpush1.msra.mxu0 0.0
    %1217 = vmatprep.subr.mxu0 0.0
    %1218 = vmatpush1.msra.mxu0 0.0
    %1219 = vmatprep.subr.mxu0 0.0
    %1220 = vmatpush1.msra.mxu0 0.0
    %1221 = vmatprep.subr.mxu0 0.0
    %1222 = vmatpush1.msra.mxu0 0.0
    %1223 = vmatprep.subr.mxu0 0.0
    %1224 = vmatpush1.msra.mxu0 0.0
    %1225 = vmatprep.subr.mxu0 0.0
    %1226 = vmatpush1.msra.mxu0 0.0
    %1227 = vmatprep.subr.mxu0 0.0
    %1228 = vmatpush1.msra.mxu0 0.0
    %1229 = vmatprep.subr.mxu0 0.0
    %1230 = vmatpush1.msra.mxu0 0.0
    %1231 = vmatprep.subr.mxu0 0.0
    %1232 = vmatpush1.msra.mxu0 0.0
    %1233 = vmatprep.subr.mxu0 0.0
    %1234 = vmatpush1.msra.mxu0 0.0
    %1235 = vmatprep.subr.mxu0 0.0
    %1236 = vmatpush1.msra.mxu0 0.0
    %1237 = vmatprep.subr.mxu0 0.0
    %1238 = vmatpush1.msra.mxu0 0.0
    %1239 = vmatprep.subr.mxu0 0.0
    %1240 = vmatpush1.msra.mxu0 0.0
    %1241 = vmatprep.subr.mxu0 0.0
    %1242 = vmatpush1.msra.mxu0 0.0
    %1243 = vmatprep.subr.mxu0 0.0
    %1244 = vmatpush1.msra.mxu0 0.0
    %1245 = vmatprep.subr.mxu0 0.0
    %1246 = vmatpush1.msra.mxu0 0.0
    %1247 = vmatprep.subr.mxu0 0.0
    %1248 = vmatpush1.msra.mxu0 0.0
    %1249 = vmatprep.subr.mxu0 0.0
    %1250 = vmatpush1.msra.mxu0 0.0
    %1251 = vmatprep.subr.mxu0 0.0
    %1252 = vmatpush1.msra.mxu0 0.0
    %1253 = vmatprep.subr.mxu0 0.0
    %1254 = vmatpush1.msra.mxu0 0.0
    %1255 = vmatprep.mubr.f32.mxu0 0.0
    %1256 = vmatmul.mubr.f32.gmra.mrb[0].mxu0 %v1118
    %v1257 = vpop.f32.mrb[0].mxu0
    %v1258 = vadd.f32 %v1081, %v1257
    %v1259 = vpop.f32.mrb[0].mxu0
    %v1260 = vadd.f32 %v1085, %v1259
    %1261 = vdwg.mxu0
    %1262 = vmatprep.subr.mxu0 %v1035
    %1263 = vmatpush1.msra.mxu0 %v1034
    %1264 = vmatprep.subr.mxu0 %v1044
    %1265 = vmatpush1.msra.mxu0 %v1043
    %1266 = vmatprep.subr.mxu0 %v1053
    %1267 = vmatpush1.msra.mxu0 %v1052
    %1268 = vmatprep.subr.mxu0 %v1062
    %1269 = vmatpush1.msra.mxu0 %v1061
    %1270 = vmatprep.subr.mxu0 0.0
    %1271 = vmatpush1.msra.mxu0 0.0
    %1272 = vmatprep.subr.mxu0 0.0
    %1273 = vmatpush1.msra.mxu0 0.0
    %1274 = vmatprep.subr.mxu0 0.0
    %1275 = vmatpush1.msra.mxu0 0.0
    %1276 = vmatprep.subr.mxu0 0.0
    %1277 = vmatpush1.msra.mxu0 0.0
    %1278 = vmatprep.subr.mxu0 0.0
    %1279 = vmatpush1.msra.mxu0 0.0
    %1280 = vmatprep.subr.mxu0 0.0
    %1281 = vmatpush1.msra.mxu0 0.0
    %1282 = vmatprep.subr.mxu0 0.0
    %1283 = vmatpush1.msra.mxu0 0.0
    %1284 = vmatprep.subr.mxu0 0.0
    %1285 = vmatpush1.msra.mxu0 0.0
    %1286 = vmatprep.subr.mxu0 0.0
    %1287 = vmatpush1.msra.mxu0 0.0
    %1288 = vmatprep.subr.mxu0 0.0
    %1289 = vmatpush1.msra.mxu0 0.0
    %1290 = vmatprep.subr.mxu0 0.0
    %1291 = vmatpush1.msra.mxu0 0.0
    %1292 = vmatprep.subr.mxu0 0.0
    %1293 = vmatpush1.msra.mxu0 0.0
    %1294 = vmatprep.subr.mxu0 0.0
    %1295 = vmatpush1.msra.mxu0 0.0
    %1296 = vmatprep.subr.mxu0 0.0
    %1297 = vmatpush1.msra.mxu0 0.0
    %1298 = vmatprep.subr.mxu0 0.0
    %1299 = vmatpush1.msra.mxu0 0.0
    %1300 = vmatprep.subr.mxu0 0.0
    %1301 = vmatpush1.msra.mxu0 0.0
    %1302 = vmatprep.subr.mxu0 0.0
    %1303 = vmatpush1.msra.mxu0 0.0
    %1304 = vmatprep.subr.mxu0 0.0
    %1305 = vmatpush1.msra.mxu0 0.0
    %1306 = vmatprep.subr.mxu0 0.0
    %1307 = vmatpush1.msra.mxu0 0.0
    %1308 = vmatprep.subr.mxu0 0.0
    %1309 = vmatpush1.msra.mxu0 0.0
    %1310 = vmatprep.subr.mxu0 0.0
    %1311 = vmatpush1.msra.mxu0 0.0
    %1312 = vmatprep.subr.mxu0 0.0
    %1313 = vmatpush1.msra.mxu0 0.0
    %1314 = vmatprep.subr.mxu0 0.0
    %1315 = vmatpush1.msra.mxu0 0.0
    %1316 = vmatprep.subr.mxu0 0.0
    %1317 = vmatpush1.msra.mxu0 0.0
    %1318 = vmatprep.subr.mxu0 0.0
    %1319 = vmatpush1.msra.mxu0 0.0
    %1320 = vmatprep.subr.mxu0 0.0
    %1321 = vmatpush1.msra.mxu0 0.0
    %1322 = vmatprep.subr.mxu0 0.0
    %1323 = vmatpush1.msra.mxu0 0.0
    %1324 = vmatprep.subr.mxu0 0.0
    %1325 = vmatpush1.msra.mxu0 0.0
    %1326 = vmatprep.mubr.f32.mxu0 0.0
    %1327 = vmatmul.mubr.f32.gmra.mrb[0].mxu0 %v1118
    %v1328 = vpop.f32.mrb[0].mxu0
    %v1329 = vadd.f32 %v1089, %v1328
    %v1330 = vpop.f32.mrb[0].mxu0
    %v1331 = vadd.f32 %v1093, %v1330
    %1332 = vdwg.mxu0
    %1333 = vmatprep.subr.mxu0 %v1037
    %1334 = vmatpush1.msra.mxu0 %v1036
    %1335 = vmatprep.subr.mxu0 %v1046
    %1336 = vmatpush1.msra.mxu0 %v1045
    %1337 = vmatprep.subr.mxu0 %v1055
    %1338 = vmatpush1.msra.mxu0 %v1054
    %1339 = vmatprep.subr.mxu0 %v1064
    %1340 = vmatpush1.msra.mxu0 %v1063
    %1341 = vmatprep.subr.mxu0 0.0
    %1342 = vmatpush1.msra.mxu0 0.0
    %1343 = vmatprep.subr.mxu0 0.0
    %1344 = vmatpush1.msra.mxu0 0.0
    %1345 = vmatprep.subr.mxu0 0.0
    %1346 = vmatpush1.msra.mxu0 0.0
    %1347 = vmatprep.subr.mxu0 0.0
    %1348 = vmatpush1.msra.mxu0 0.0
    %1349 = vmatprep.subr.mxu0 0.0
    %1350 = vmatpush1.msra.mxu0 0.0
    %1351 = vmatprep.subr.mxu0 0.0
    %1352 = vmatpush1.msra.mxu0 0.0
    %1353 = vmatprep.subr.mxu0 0.0
    %1354 = vmatpush1.msra.mxu0 0.0
    %1355 = vmatprep.subr.mxu0 0.0
    %1356 = vmatpush1.msra.mxu0 0.0
    %1357 = vmatprep.subr.mxu0 0.0
    %1358 = vmatpush1.msra.mxu0 0.0
    %1359 = vmatprep.subr.mxu0 0.0
    %1360 = vmatpush1.msra.mxu0 0.0
    %1361 = vmatprep.subr.mxu0 0.0
    %1362 = vmatpush1.msra.mxu0 0.0
    %1363 = vmatprep.subr.mxu0 0.0
    %1364 = vmatpush1.msra.mxu0 0.0
    %1365 = vmatprep.subr.mxu0 0.0
    %1366 = vmatpush1.msra.mxu0 0.0
    %1367 = vmatprep.subr.mxu0 0.0
    %1368 = vmatpush1.msra.mxu0 0.0
    %1369 = vmatprep.subr.mxu0 0.0
    %1370 = vmatpush1.msra.mxu0 0.0
    %1371 = vmatprep.subr.mxu0 0.0
    %1372 = vmatpush1.msra.mxu0 0.0
    %1373 = vmatprep.subr.mxu0 0.0
    %1374 = vmatpush1.msra.mxu0 0.0
    %1375 = vmatprep.subr.mxu0 0.0
    %1376 = vmatpush1.msra.mxu0 0.0
    %1377 = vmatprep.subr.mxu0 0.0
    %1378 = vmatpush1.msra.mxu0 0.0
    %1379 = vmatprep.subr.mxu0 0.0
    %1380 = vmatpush1.msra.mxu0 0.0
    %1381 = vmatprep.subr.mxu0 0.0
    %1382 = vmatpush1.msra.mxu0 0.0
    %1383 = vmatprep.subr.mxu0 0.0
    %1384 = vmatpush1.msra.mxu0 0.0
    %1385 = vmatprep.subr.mxu0 0.0
    %1386 = vmatpush1.msra.mxu0 0.0
    %1387 = vmatprep.subr.mxu0 0.0
    %1388 = vmatpush1.msra.mxu0 0.0
    %1389 = vmatprep.subr.mxu0 0.0
    %1390 = vmatpush1.msra.mxu0 0.0
    %1391 = vmatprep.subr.mxu0 0.0
    %1392 = vmatpush1.msra.mxu0 0.0
    %1393 = vmatprep.subr.mxu0 0.0
    %1394 = vmatpush1.msra.mxu0 0.0
    %1395 = vmatprep.subr.mxu0 0.0
    %1396 = vmatpush1.msra.mxu0 0.0
    %1397 = vmatprep.mubr.f32.mxu0 0.0
    %1398 = vmatmul.mubr.f32.gmra.mrb[0].mxu0 %v1118
    %v1399 = vpop.f32.mrb[0].mxu0
    %v1400 = vadd.f32 %v1097, %v1399
    %v1401 = vpop.f32.mrb[0].mxu0
    %v1402 = vadd.f32 %v1101, %v1401
    %1403 = vdwg.mxu0
    %1404 = vmatprep.subr.mxu0 0.0
    %1405 = vmatpush1.msra.mxu0 %v1038
    %1406 = vmatprep.subr.mxu0 0.0
    %1407 = vmatpush1.msra.mxu0 %v1047
    %1408 = vmatprep.subr.mxu0 0.0
    %1409 = vmatpush1.msra.mxu0 %v1056
    %1410 = vmatprep.subr.mxu0 0.0
    %1411 = vmatpush1.msra.mxu0 %v1065
    %1412 = vmatprep.subr.mxu0 0.0
    %1413 = vmatpush1.msra.mxu0 0.0
    %1414 = vmatprep.subr.mxu0 0.0
    %1415 = vmatpush1.msra.mxu0 0.0
    %1416 = vmatprep.subr.mxu0 0.0
    %1417 = vmatpush1.msra.mxu0 0.0
    %1418 = vmatprep.subr.mxu0 0.0
    %1419 = vmatpush1.msra.mxu0 0.0
    %1420 = vmatprep.subr.mxu0 0.0
    %1421 = vmatpush1.msra.mxu0 0.0
    %1422 = vmatprep.subr.mxu0 0.0
    %1423 = vmatpush1.msra.mxu0 0.0
    %1424 = vmatprep.subr.mxu0 0.0
    %1425 = vmatpush1.msra.mxu0 0.0
    %1426 = vmatprep.subr.mxu0 0.0
    %1427 = vmatpush1.msra.mxu0 0.0
    %1428 = vmatprep.subr.mxu0 0.0
    %1429 = vmatpush1.msra.mxu0 0.0
    %1430 = vmatprep.subr.mxu0 0.0
    %1431 = vmatpush1.msra.mxu0 0.0
    %1432 = vmatprep.subr.mxu0 0.0
    %1433 = vmatpush1.msra.mxu0 0.0
    %1434 = vmatprep.subr.mxu0 0.0
    %1435 = vmatpush1.msra.mxu0 0.0
    %1436 = vmatprep.subr.mxu0 0.0
    %1437 = vmatpush1.msra.mxu0 0.0
    %1438 = vmatprep.subr.mxu0 0.0
    %1439 = vmatpush1.msra.mxu0 0.0
    %1440 = vmatprep.subr.mxu0 0.0
    %1441 = vmatpush1.msra.mxu0 0.0
    %1442 = vmatprep.subr.mxu0 0.0
    %1443 = vmatpush1.msra.mxu0 0.0
    %1444 = vmatprep.subr.mxu0 0.0
    %1445 = vmatpush1.msra.mxu0 0.0
    %1446 = vmatprep.subr.mxu0 0.0
    %1447 = vmatpush1.msra.mxu0 0.0
    %1448 = vmatprep.subr.mxu0 0.0
    %1449 = vmatpush1.msra.mxu0 0.0
    %1450 = vmatprep.subr.mxu0 0.0
    %1451 = vmatpush1.msra.mxu0 0.0
    %1452 = vmatprep.subr.mxu0 0.0
    %1453 = vmatpush1.msra.mxu0 0.0
    %1454 = vmatprep.subr.mxu0 0.0
    %1455 = vmatpush1.msra.mxu0 0.0
    %1456 = vmatprep.subr.mxu0 0.0
    %1457 = vmatpush1.msra.mxu0 0.0
    %1458 = vmatprep.subr.mxu0 0.0
    %1459 = vmatpush1.msra.mxu0 0.0
    %1460 = vmatprep.subr.mxu0 0.0
    %1461 = vmatpush1.msra.mxu0 0.0
    %1462 = vmatprep.subr.mxu0 0.0
    %1463 = vmatpush1.msra.mxu0 0.0
    %1464 = vmatprep.subr.mxu0 0.0
    %1465 = vmatpush1.msra.mxu0 0.0
    %1466 = vmatprep.subr.mxu0 0.0
    %1467 = vmatpush1.msra.mxu0 0.0
    %1468 = vmatprep.mubr.f32.mxu0 0.0
    %1469 = vmatmul.mubr.f32.gmra.mrb[0].mxu0 %v1118
    %v1470 = vpop.f32.mrb[0].mxu0
    %v1471 = vadd.f32 %v1105, %v1470
    %v1472 = vpop.f32.mrb[0].mxu0
    %1473 = vdwg.mxu0
    %v1474 = vld [vmem:[%s7] sm:$0xff]
    %v1475 = vld [vmem:[%s7 + $0x8] sm:$0xff]
    %v1476 = vld [vmem:[%s7 + $0x10] sm:$0xff]
    %v1477 = vld [vmem:[%s7 + $0x18] sm:$0xff]
    %v1478 = vld [vmem:[%s8] sm:$0x1]
    %v1480 = vlaneseq
    %v1481 = vshrl.u32 %v1480, 7
    %v1482 = vsub.s32 0, %v1481
    %v1483 = vrot.slane %v1478, %v1482
    %1484 = vmatprep.subr.mxu0 0.0
    %1485 = vmatpush1.msra.mxu0 %v1474
    %1486 = vmatprep.subr.mxu0 0.0
    %1487 = vmatpush1.msra.mxu0 %v1475
    %1488 = vmatprep.subr.mxu0 0.0
    %1489 = vmatpush1.msra.mxu0 %v1476
    %1490 = vmatprep.subr.mxu0 0.0
    %1491 = vmatpush1.msra.mxu0 %v1477
    %1492 = vmatprep.subr.mxu0 0.0
    %1493 = vmatpush1.msra.mxu0 0.0
    %1494 = vmatprep.subr.mxu0 0.0
    %1495 = vmatpush1.msra.mxu0 0.0
    %1496 = vmatprep.subr.mxu0 0.0
    %1497 = vmatpush1.msra.mxu0 0.0
    %1498 = vmatprep.subr.mxu0 0.0
    %1499 = vmatpush1.msra.mxu0 0.0
    %1500 = vmatprep.subr.mxu0 0.0
    %1501 = vmatpush1.msra.mxu0 0.0
    %1502 = vmatprep.subr.mxu0 0.0
    %1503 = vmatpush1.msra.mxu0 0.0
    %1504 = vmatprep.subr.mxu0 0.0
    %1505 = vmatpush1.msra.mxu0 0.0
    %1506 = vmatprep.subr.mxu0 0.0
    %1507 = vmatpush1.msra.mxu0 0.0
    %1508 = vmatprep.subr.mxu0 0.0
    %1509 = vmatpush1.msra.mxu0 0.0
    %1510 = vmatprep.subr.mxu0 0.0
    %1511 = vmatpush1.msra.mxu0 0.0
    %1512 = vmatprep.subr.mxu0 0.0
    %1513 = vmatpush1.msra.mxu0 0.0
    %1514 = vmatprep.subr.mxu0 0.0
    %1515 = vmatpush1.msra.mxu0 0.0
    %1516 = vmatprep.subr.mxu0 0.0
    %1517 = vmatpush1.msra.mxu0 0.0
    %1518 = vmatprep.subr.mxu0 0.0
    %1519 = vmatpush1.msra.mxu0 0.0
    %1520 = vmatprep.subr.mxu0 0.0
    %1521 = vmatpush1.msra.mxu0 0.0
    %1522 = vmatprep.subr.mxu0 0.0
    %1523 = vmatpush1.msra.mxu0 0.0
    %1524 = vmatprep.subr.mxu0 0.0
    %1525 = vmatpush1.msra.mxu0 0.0
    %1526 = vmatprep.subr.mxu0 0.0
    %1527 = vmatpush1.msra.mxu0 0.0
    %1528 = vmatprep.subr.mxu0 0.0
    %1529 = vmatpush1.msra.mxu0 0.0
    %1530 = vmatprep.subr.mxu0 0.0
    %1531 = vmatpush1.msra.mxu0 0.0
    %1532 = vmatprep.subr.mxu0 0.0
    %1533 = vmatpush1.msra.mxu0 0.0
    %1534 = vmatprep.subr.mxu0 0.0
    %1535 = vmatpush1.msra.mxu0 0.0
    %1536 = vmatprep.subr.mxu0 0.0
    %1537 = vmatpush1.msra.mxu0 0.0
    %1538 = vmatprep.subr.mxu0 0.0
    %1539 = vmatpush1.msra.mxu0 0.0
    %1540 = vmatprep.subr.mxu0 0.0
    %1541 = vmatpush1.msra.mxu0 0.0
    %1542 = vmatprep.subr.mxu0 0.0
    %1543 = vmatpush1.msra.mxu0 0.0
    %1544 = vmatprep.subr.mxu0 0.0
    %1545 = vmatpush1.msra.mxu0 0.0
    %1546 = vmatprep.subr.mxu0 0.0
    %1547 = vmatpush1.msra.mxu0 0.0
    %1548 = vmatprep.mubr.f32.mxu0 0.0
    %1549 = vmatmul.mubr.f32.gmra.mrb[0].mxu0 %v214
    %v1550 = vpop.f32.mrb[0].mxu0
    %v1551 = vadd.f32 0.0, %v1550
    %v1552 = vpop.f32.mrb[0].mxu0
    %1553 = vdwg.mxu0
    %v1554 = vadd.f32 %v1187, %v1551
    %v1555 = vxor.u32 %v1554, 2147483648
    %v1556 = vmul.f32 %v1555, 1.442695
    %v1557 = vpow.pop %v1556
    %v1558 = vadd.f32 %v1557, 1.0
    %v1559 = vrcp.pop %v1558
    %v1560 = vmul.f32 1.0, %v1559
    %1561 = vrot.lane.b32.xlu0 %v1483, 64
    %v1562 = vpop.permute.xlu0 %1561
    %v1564 = vadd.f32 %v1551, %v1562
    %1566 = vrot.lane.b32.xlu0 %v1564, 64
    %v1567 = vpop.permute.xlu0 %1566
    %v1569 = vmul.f32 %v1560, %v1567
    %1571 = vrot.lane.b32.xlu0 %v1569, 64
    %v1572 = vpop.permute.xlu0 %1571
    %v1574 = vadd.f32 %v1187, %v1572
    %v1575 = vtanh.pop %v1574
    %v1576 = vsub.f32 1.0, %v1560
    %1578 = vrot.lane.b32.xlu0 %v1575, 96
    %v1579 = vpop.permute.xlu0 %1578
    %v1581 = vmul.f32 %v1576, %v1579
    %v1582 = vmul.f32 %v1560, 0.0
    %v1583 = vadd.f32 %v1581, %v1582
    %1585 = vrot.lane.b32.xlu0 %v1583, 96
    %v1586 = vpop.permute.xlu0 %1585
    %v1587 = vsel %vm212, %v1586, 0
    %1589 = vmatprep.subr.mxu0 0.0
    %1590 = vmatpush1.msra.mxu0 %v1474
    %1591 = vmatprep.subr.mxu0 0.0
    %1592 = vmatpush1.msra.mxu0 %v1475
    %1593 = vmatprep.subr.mxu0 0.0
    %1594 = vmatpush1.msra.mxu0 %v1476
    %1595 = vmatprep.subr.mxu0 0.0
    %1596 = vmatpush1.msra.mxu0 %v1477
    %1597 = vmatprep.subr.mxu0 0.0
    %1598 = vmatpush1.msra.mxu0 0.0
    %1599 = vmatprep.subr.mxu0 0.0
    %1600 = vmatpush1.msra.mxu0 0.0
    %1601 = vmatprep.subr.mxu0 0.0
    %1602 = vmatpush1.msra.mxu0 0.0
    %1603 = vmatprep.subr.mxu0 0.0
    %1604 = vmatpush1.msra.mxu0 0.0
    %1605 = vmatprep.subr.mxu0 0.0
    %1606 = vmatpush1.msra.mxu0 0.0
    %1607 = vmatprep.subr.mxu0 0.0
    %1608 = vmatpush1.msra.mxu0 0.0
    %1609 = vmatprep.subr.mxu0 0.0
    %1610 = vmatpush1.msra.mxu0 0.0
    %1611 = vmatprep.subr.mxu0 0.0
    %1612 = vmatpush1.msra.mxu0 0.0
    %1613 = vmatprep.subr.mxu0 0.0
    %1614 = vmatpush1.msra.mxu0 0.0
    %1615 = vmatprep.subr.mxu0 0.0
    %1616 = vmatpush1.msra.mxu0 0.0
    %1617 = vmatprep.subr.mxu0 0.0
    %1618 = vmatpush1.msra.mxu0 0.0
    %1619 = vmatprep.subr.mxu0 0.0
    %1620 = vmatpush1.msra.mxu0 0.0
    %1621 = vmatprep.subr.mxu0 0.0
    %1622 = vmatpush1.msra.mxu0 0.0
    %1623 = vmatprep.subr.mxu0 0.0
    %1624 = vmatpush1.msra.mxu0 0.0
    %1625 = vmatprep.subr.mxu0 0.0
    %1626 = vmatpush1.msra.mxu0 0.0
    %1627 = vmatprep.subr.mxu0 0.0
    %1628 = vmatpush1.msra.mxu0 0.0
    %1629 = vmatprep.subr.mxu0 0.0
    %1630 = vmatpush1.msra.mxu0 0.0
    %1631 = vmatprep.subr.mxu0 0.0
    %1632 = vmatpush1.msra.mxu0 0.0
    %1633 = vmatprep.subr.mxu0 0.0
    %1634 = vmatpush1.msra.mxu0 0.0
    %1635 = vmatprep.subr.mxu0 0.0
    %1636 = vmatpush1.msra.mxu0 0.0
    %1637 = vmatprep.subr.mxu0 0.0
    %1638 = vmatpush1.msra.mxu0 0.0
    %1639 = vmatprep.subr.mxu0 0.0
    %1640 = vmatpush1.msra.mxu0 0.0
    %1641 = vmatprep.subr.mxu0 0.0
    %1642 = vmatpush1.msra.mxu0 0.0
    %1643 = vmatprep.subr.mxu0 0.0
    %1644 = vmatpush1.msra.mxu0 0.0
    %1645 = vmatprep.subr.mxu0 0.0
    %1646 = vmatpush1.msra.mxu0 0.0
    %1647 = vmatprep.subr.mxu0 0.0
    %1648 = vmatpush1.msra.mxu0 0.0
    %1649 = vmatprep.subr.mxu0 0.0
    %1650 = vmatpush1.msra.mxu0 0.0
    %1651 = vmatprep.subr.mxu0 0.0
    %1652 = vmatpush1.msra.mxu0 0.0
    %1653 = vmatprep.mubr.f32.mxu0 0.0
    %1654 = vmatmul.mubr.f32.gmra.mrb[0].mxu0 %v1587
    %v1655 = vpop.f32.mrb[0].mxu0
    %v1656 = vadd.f32 0.0, %v1655
    %v1657 = vpop.f32.mrb[0].mxu0
    %1658 = vdwg.mxu0
    %v1659 = vadd.f32 %v1189, %v1656
    %v1660 = vxor.u32 %v1659, 2147483648
    %v1661 = vmul.f32 %v1660, 1.442695
    %v1662 = vpow.pop %v1661
    %v1663 = vadd.f32 %v1662, 1.0
    %v1664 = vrcp.pop %v1663
    %v1665 = vmul.f32 1.0, %v1664
    %v1666 = vadd.f32 %v1656, %v1562
    %1668 = vrot.lane.b32.xlu0 %v1666, 64
    %v1669 = vpop.permute.xlu0 %1668
    %v1671 = vmul.f32 %v1665, %v1669
    %1673 = vrot.lane.b32.xlu0 %v1671, 64
    %v1674 = vpop.permute.xlu0 %1673
    %v1676 = vadd.f32 %v1189, %v1674
    %v1677 = vtanh.pop %v1676
    %v1678 = vsub.f32 1.0, %v1665
    %1680 = vrot.lane.b32.xlu0 %v1677, 96
    %v1681 = vpop.permute.xlu0 %1680
    %v1683 = vmul.f32 %v1678, %v1681
    %v1684 = vmul.f32 %v1665, %v1583
    %v1685 = vadd.f32 %v1683, %v1684
    %1687 = vrot.lane.b32.xlu0 %v1685, 96
    %v1688 = vpop.permute.xlu0 %1687
    %v1689 = vsel %vm212, %v1688, 0
    %1691 = vmatprep.subr.mxu0 0.0
    %1692 = vmatpush1.msra.mxu0 %v1474
    %1693 = vmatprep.subr.mxu0 0.0
    %1694 = vmatpush1.msra.mxu0 %v1475
    %1695 = vmatprep.subr.mxu0 0.0
    %1696 = vmatpush1.msra.mxu0 %v1476
    %1697 = vmatprep.subr.mxu0 0.0
    %1698 = vmatpush1.msra.mxu0 %v1477
    %1699 = vmatprep.subr.mxu0 0.0
    %1700 = vmatpush1.msra.mxu0 0.0
    %1701 = vmatprep.subr.mxu0 0.0
    %1702 = vmatpush1.msra.mxu0 0.0
    %1703 = vmatprep.subr.mxu0 0.0
    %1704 = vmatpush1.msra.mxu0 0.0
    %1705 = vmatprep.subr.mxu0 0.0
    %1706 = vmatpush1.msra.mxu0 0.0
    %1707 = vmatprep.subr.mxu0 0.0
    %1708 = vmatpush1.msra.mxu0 0.0
    %1709 = vmatprep.subr.mxu0 0.0
    %1710 = vmatpush1.msra.mxu0 0.0
    %1711 = vmatprep.subr.mxu0 0.0
    %1712 = vmatpush1.msra.mxu0 0.0
    %1713 = vmatprep.subr.mxu0 0.0
    %1714 = vmatpush1.msra.mxu0 0.0
    %1715 = vmatprep.subr.mxu0 0.0
    %1716 = vmatpush1.msra.mxu0 0.0
    %1717 = vmatprep.subr.mxu0 0.0
    %1718 = vmatpush1.msra.mxu0 0.0
    %1719 = vmatprep.subr.mxu0 0.0
    %1720 = vmatpush1.msra.mxu0 0.0
    %1721 = vmatprep.subr.mxu0 0.0
    %1722 = vmatpush1.msra.mxu0 0.0
    %1723 = vmatprep.subr.mxu0 0.0
    %1724 = vmatpush1.msra.mxu0 0.0
    %1725 = vmatprep.subr.mxu0 0.0
    %1726 = vmatpush1.msra.mxu0 0.0
    %1727 = vmatprep.subr.mxu0 0.0
    %1728 = vmatpush1.msra.mxu0 0.0
    %1729 = vmatprep.subr.mxu0 0.0
    %1730 = vmatpush1.msra.mxu0 0.0
    %1731 = vmatprep.subr.mxu0 0.0
    %1732 = vmatpush1.msra.mxu0 0.0
    %1733 = vmatprep.subr.mxu0 0.0
    %1734 = vmatpush1.msra.mxu0 0.0
    %1735 = vmatprep.subr.mxu0 0.0
    %1736 = vmatpush1.msra.mxu0 0.0
    %1737 = vmatprep.subr.mxu0 0.0
    %1738 = vmatpush1.msra.mxu0 0.0
    %1739 = vmatprep.subr.mxu0 0.0
    %1740 = vmatpush1.msra.mxu0 0.0
    %1741 = vmatprep.subr.mxu0 0.0
    %1742 = vmatpush1.msra.mxu0 0.0
    %1743 = vmatprep.subr.mxu0 0.0
    %1744 = vmatpush1.msra.mxu0 0.0
    %1745 = vmatprep.subr.mxu0 0.0
    %1746 = vmatpush1.msra.mxu0 0.0
    %1747 = vmatprep.subr.mxu0 0.0
    %1748 = vmatpush1.msra.mxu0 0.0
    %1749 = vmatprep.subr.mxu0 0.0
    %1750 = vmatpush1.msra.mxu0 0.0
    %1751 = vmatprep.subr.mxu0 0.0
    %1752 = vmatpush1.msra.mxu0 0.0
    %1753 = vmatprep.subr.mxu0 0.0
    %1754 = vmatpush1.msra.mxu0 0.0
    %1755 = vmatprep.mubr.f32.mxu0 0.0
    %1756 = vmatmul.mubr.f32.gmra.mrb[0].mxu0 %v1689
    %v1757 = vpop.f32.mrb[0].mxu0
    %v1758 = vadd.f32 0.0, %v1757
    %v1759 = vpop.f32.mrb[0].mxu0
    %1760 = vdwg.mxu0
    %v1761 = vadd.f32 %v1258, %v1758
    %v1762 = vxor.u32 %v1761, 2147483648
    %v1763 = vmul.f32 %v1762, 1.442695
    %v1764 = vpow.pop %v1763
    %v1765 = vadd.f32 %v1764, 1.0
    %v1766 = vrcp.pop %v1765
    %v1767 = vmul.f32 1.0, %v1766
    %v1768 = vadd.f32 %v1758, %v1562
    %1770 = vrot.lane.b32.xlu0 %v1768, 64
    %v1771 = vpop.permute.xlu0 %1770
    %v1773 = vmul.f32 %v1767, %v1771
    %1775 = vrot.lane.b32.xlu0 %v1773, 64
    %v1776 = vpop.permute.xlu0 %1775
    %v1778 = vadd.f32 %v1258, %v1776
    %v1779 = vtanh.pop %v1778
    %v1780 = vsub.f32 1.0, %v1767
    %1782 = vrot.lane.b32.xlu0 %v1779, 96
    %v1783 = vpop.permute.xlu0 %1782
    %v1785 = vmul.f32 %v1780, %v1783
    %v1786 = vmul.f32 %v1767, %v1685
    %v1787 = vadd.f32 %v1785, %v1786
    %1789 = vrot.lane.b32.xlu0 %v1787, 96
    %v1790 = vpop.permute.xlu0 %1789
    %v1791 = vsel %vm212, %v1790, 0
    %1793 = vmatprep.subr.mxu0 0.0
    %1794 = vmatpush1.msra.mxu0 %v1474
    %1795 = vmatprep.subr.mxu0 0.0
    %1796 = vmatpush1.msra.mxu0 %v1475
    %1797 = vmatprep.subr.mxu0 0.0
    %1798 = vmatpush1.msra.mxu0 %v1476
    %1799 = vmatprep.subr.mxu0 0.0
    %1800 = vmatpush1.msra.mxu0 %v1477
    %1801 = vmatprep.subr.mxu0 0.0
    %1802 = vmatpush1.msra.mxu0 0.0
    %1803 = vmatprep.subr.mxu0 0.0
    %1804 = vmatpush1.msra.mxu0 0.0
    %1805 = vmatprep.subr.mxu0 0.0
    %1806 = vmatpush1.msra.mxu0 0.0
    %1807 = vmatprep.subr.mxu0 0.0
    %1808 = vmatpush1.msra.mxu0 0.0
    %1809 = vmatprep.subr.mxu0 0.0
    %1810 = vmatpush1.msra.mxu0 0.0
    %1811 = vmatprep.subr.mxu0 0.0
    %1812 = vmatpush1.msra.mxu0 0.0
    %1813 = vmatprep.subr.mxu0 0.0
    %1814 = vmatpush1.msra.mxu0 0.0
    %1815 = vmatprep.subr.mxu0 0.0
    %1816 = vmatpush1.msra.mxu0 0.0
    %1817 = vmatprep.subr.mxu0 0.0
    %1818 = vmatpush1.msra.mxu0 0.0
    %1819 = vmatprep.subr.mxu0 0.0
    %1820 = vmatpush1.msra.mxu0 0.0
    %1821 = vmatprep.subr.mxu0 0.0
    %1822 = vmatpush1.msra.mxu0 0.0
    %1823 = vmatprep.subr.mxu0 0.0
    %1824 = vmatpush1.msra.mxu0 0.0
    %1825 = vmatprep.subr.mxu0 0.0
    %1826 = vmatpush1.msra.mxu0 0.0
    %1827 = vmatprep.subr.mxu0 0.0
    %1828 = vmatpush1.msra.mxu0 0.0
    %1829 = vmatprep.subr.mxu0 0.0
    %1830 = vmatpush1.msra.mxu0 0.0
    %1831 = vmatprep.subr.mxu0 0.0
    %1832 = vmatpush1.msra.mxu0 0.0
    %1833 = vmatprep.subr.mxu0 0.0
    %1834 = vmatpush1.msra.mxu0 0.0
    %1835 = vmatprep.subr.mxu0 0.0
    %1836 = vmatpush1.msra.mxu0 0.0
    %1837 = vmatprep.subr.mxu0 0.0
    %1838 = vmatpush1.msra.mxu0 0.0
    %1839 = vmatprep.subr.mxu0 0.0
    %1840 = vmatpush1.msra.mxu0 0.0
    %1841 = vmatprep.subr.mxu0 0.0
    %1842 = vmatpush1.msra.mxu0 0.0
    %1843 = vmatprep.subr.mxu0 0.0
    %1844 = vmatpush1.msra.mxu0 0.0
    %1845 = vmatprep.subr.mxu0 0.0
    %1846 = vmatpush1.msra.mxu0 0.0
    %1847 = vmatprep.subr.mxu0 0.0
    %1848 = vmatpush1.msra.mxu0 0.0
    %1849 = vmatprep.subr.mxu0 0.0
    %1850 = vmatpush1.msra.mxu0 0.0
    %1851 = vmatprep.subr.mxu0 0.0
    %1852 = vmatpush1.msra.mxu0 0.0
    %1853 = vmatprep.subr.mxu0 0.0
    %1854 = vmatpush1.msra.mxu0 0.0
    %1855 = vmatprep.subr.mxu0 0.0
    %1856 = vmatpush1.msra.mxu0 0.0
    %1857 = vmatprep.mubr.f32.mxu0 0.0
    %1858 = vmatmul.mubr.f32.gmra.mrb[0].mxu0 %v1791
    %v1859 = vpop.f32.mrb[0].mxu0
    %v1860 = vadd.f32 0.0, %v1859
    %v1861 = vpop.f32.mrb[0].mxu0
    %1862 = vdwg.mxu0
    %v1863 = vadd.f32 %v1260, %v1860
    %v1864 = vxor.u32 %v1863, 2147483648
    %v1865 = vmul.f32 %v1864, 1.442695
    %v1866 = vpow.pop %v1865
    %v1867 = vadd.f32 %v1866, 1.0
    %v1868 = vrcp.pop %v1867
    %v1869 = vmul.f32 1.0, %v1868
    %v1870 = vadd.f32 %v1860, %v1562
    %1872 = vrot.lane.b32.xlu0 %v1870, 64
    %v1873 = vpop.permute.xlu0 %1872
    %v1875 = vmul.f32 %v1869, %v1873
    %1877 = vrot.lane.b32.xlu0 %v1875, 64
    %v1878 = vpop.permute.xlu0 %1877
    %v1880 = vadd.f32 %v1260, %v1878
    %v1881 = vtanh.pop %v1880
    %v1882 = vsub.f32 1.0, %v1869
    %1884 = vrot.lane.b32.xlu0 %v1881, 96
    %v1885 = vpop.permute.xlu0 %1884
    %v1887 = vmul.f32 %v1882, %v1885
    %v1888 = vmul.f32 %v1869, %v1787
    %v1889 = vadd.f32 %v1887, %v1888
    %1891 = vrot.lane.b32.xlu0 %v1889, 96
    %v1892 = vpop.permute.xlu0 %1891
    %v1893 = vsel %vm212, %v1892, 0
    %1895 = vmatprep.subr.mxu0 0.0
    %1896 = vmatpush1.msra.mxu0 %v1474
    %1897 = vmatprep.subr.mxu0 0.0
    %1898 = vmatpush1.msra.mxu0 %v1475
    %1899 = vmatprep.subr.mxu0 0.0
    %1900 = vmatpush1.msra.mxu0 %v1476
    %1901 = vmatprep.subr.mxu0 0.0
    %1902 = vmatpush1.msra.mxu0 %v1477
    %1903 = vmatprep.subr.mxu0 0.0
    %1904 = vmatpush1.msra.mxu0 0.0
    %1905 = vmatprep.subr.mxu0 0.0
    %1906 = vmatpush1.msra.mxu0 0.0
    %1907 = vmatprep.subr.mxu0 0.0
    %1908 = vmatpush1.msra.mxu0 0.0
    %1909 = vmatprep.subr.mxu0 0.0
    %1910 = vmatpush1.msra.mxu0 0.0
    %1911 = vmatprep.subr.mxu0 0.0
    %1912 = vmatpush1.msra.mxu0 0.0
    %1913 = vmatprep.subr.mxu0 0.0
    %1914 = vmatpush1.msra.mxu0 0.0
    %1915 = vmatprep.subr.mxu0 0.0
    %1916 = vmatpush1.msra.mxu0 0.0
    %1917 = vmatprep.subr.mxu0 0.0
    %1918 = vmatpush1.msra.mxu0 0.0
    %1919 = vmatprep.subr.mxu0 0.0
    %1920 = vmatpush1.msra.mxu0 0.0
    %1921 = vmatprep.subr.mxu0 0.0
    %1922 = vmatpush1.msra.mxu0 0.0
    %1923 = vmatprep.subr.mxu0 0.0
    %1924 = vmatpush1.msra.mxu0 0.0
    %1925 = vmatprep.subr.mxu0 0.0
    %1926 = vmatpush1.msra.mxu0 0.0
    %1927 = vmatprep.subr.mxu0 0.0
    %1928 = vmatpush1.msra.mxu0 0.0
    %1929 = vmatprep.subr.mxu0 0.0
    %1930 = vmatpush1.msra.mxu0 0.0
    %1931 = vmatprep.subr.mxu0 0.0
    %1932 = vmatpush1.msra.mxu0 0.0
    %1933 = vmatprep.subr.mxu0 0.0
    %1934 = vmatpush1.msra.mxu0 0.0
    %1935 = vmatprep.subr.mxu0 0.0
    %1936 = vmatpush1.msra.mxu0 0.0
    %1937 = vmatprep.subr.mxu0 0.0
    %1938 = vmatpush1.msra.mxu0 0.0
    %1939 = vmatprep.subr.mxu0 0.0
    %1940 = vmatpush1.msra.mxu0 0.0
    %1941 = vmatprep.subr.mxu0 0.0
    %1942 = vmatpush1.msra.mxu0 0.0
    %1943 = vmatprep.subr.mxu0 0.0
    %1944 = vmatpush1.msra.mxu0 0.0
    %1945 = vmatprep.subr.mxu0 0.0
    %1946 = vmatpush1.msra.mxu0 0.0
    %1947 = vmatprep.subr.mxu0 0.0
    %1948 = vmatpush1.msra.mxu0 0.0
    %1949 = vmatprep.subr.mxu0 0.0
    %1950 = vmatpush1.msra.mxu0 0.0
    %1951 = vmatprep.subr.mxu0 0.0
    %1952 = vmatpush1.msra.mxu0 0.0
    %1953 = vmatprep.subr.mxu0 0.0
    %1954 = vmatpush1.msra.mxu0 0.0
    %1955 = vmatprep.subr.mxu0 0.0
    %1956 = vmatpush1.msra.mxu0 0.0
    %1957 = vmatprep.subr.mxu0 0.0
    %1958 = vmatpush1.msra.mxu0 0.0
    %1959 = vmatprep.mubr.f32.mxu0 0.0
    %1960 = vmatmul.mubr.f32.gmra.mrb[0].mxu0 %v1893
    %v1961 = vpop.f32.mrb[0].mxu0
    %v1962 = vadd.f32 0.0, %v1961
    %v1963 = vpop.f32.mrb[0].mxu0
    %1964 = vdwg.mxu0
    %v1965 = vadd.f32 %v1329, %v1962
    %v1966 = vxor.u32 %v1965, 2147483648
    %v1967 = vmul.f32 %v1966, 1.442695
    %v1968 = vpow.pop %v1967
    %v1969 = vadd.f32 %v1968, 1.0
    %v1970 = vrcp.pop %v1969
    %v1971 = vmul.f32 1.0, %v1970
    %v1972 = vadd.f32 %v1962, %v1562
    %1974 = vrot.lane.b32.xlu0 %v1972, 64
    %v1975 = vpop.permute.xlu0 %1974
    %v1977 = vmul.f32 %v1971, %v1975
    %1979 = vrot.lane.b32.xlu0 %v1977, 64
    %v1980 = vpop.permute.xlu0 %1979
    %v1982 = vadd.f32 %v1329, %v1980
    %v1983 = vtanh.pop %v1982
    %v1984 = vsub.f32 1.0, %v1971
    %1986 = vrot.lane.b32.xlu0 %v1983, 96
    %v1987 = vpop.permute.xlu0 %1986
    %v1989 = vmul.f32 %v1984, %v1987
    %v1990 = vmul.f32 %v1971, %v1889
    %v1991 = vadd.f32 %v1989, %v1990
    %1993 = vrot.lane.b32.xlu0 %v1991, 96
    %v1994 = vpop.permute.xlu0 %1993
    %v1995 = vsel %vm212, %v1994, 0
    %1997 = vmatprep.subr.mxu0 0.0
    %1998 = vmatpush1.msra.mxu0 %v1474
    %1999 = vmatprep.subr.mxu0 0.0
    %2000 = vmatpush1.msra.mxu0 %v1475
    %2001 = vmatprep.subr.mxu0 0.0
    %2002 = vmatpush1.msra.mxu0 %v1476
    %2003 = vmatprep.subr.mxu0 0.0
    %2004 = vmatpush1.msra.mxu0 %v1477
    %2005 = vmatprep.subr.mxu0 0.0
    %2006 = vmatpush1.msra.mxu0 0.0
    %2007 = vmatprep.subr.mxu0 0.0
    %2008 = vmatpush1.msra.mxu0 0.0
    %2009 = vmatprep.subr.mxu0 0.0
    %2010 = vmatpush1.msra.mxu0 0.0
    %2011 = vmatprep.subr.mxu0 0.0
    %2012 = vmatpush1.msra.mxu0 0.0
    %2013 = vmatprep.subr.mxu0 0.0
    %2014 = vmatpush1.msra.mxu0 0.0
    %2015 = vmatprep.subr.mxu0 0.0
    %2016 = vmatpush1.msra.mxu0 0.0
    %2017 = vmatprep.subr.mxu0 0.0
    %2018 = vmatpush1.msra.mxu0 0.0
    %2019 = vmatprep.subr.mxu0 0.0
    %2020 = vmatpush1.msra.mxu0 0.0
    %2021 = vmatprep.subr.mxu0 0.0
    %2022 = vmatpush1.msra.mxu0 0.0
    %2023 = vmatprep.subr.mxu0 0.0
    %2024 = vmatpush1.msra.mxu0 0.0
    %2025 = vmatprep.subr.mxu0 0.0
    %2026 = vmatpush1.msra.mxu0 0.0
    %2027 = vmatprep.subr.mxu0 0.0
    %2028 = vmatpush1.msra.mxu0 0.0
    %2029 = vmatprep.subr.mxu0 0.0
    %2030 = vmatpush1.msra.mxu0 0.0
    %2031 = vmatprep.subr.mxu0 0.0
    %2032 = vmatpush1.msra.mxu0 0.0
    %2033 = vmatprep.subr.mxu0 0.0
    %2034 = vmatpush1.msra.mxu0 0.0
    %2035 = vmatprep.subr.mxu0 0.0
    %2036 = vmatpush1.msra.mxu0 0.0
    %2037 = vmatprep.subr.mxu0 0.0
    %2038 = vmatpush1.msra.mxu0 0.0
    %2039 = vmatprep.subr.mxu0 0.0
    %2040 = vmatpush1.msra.mxu0 0.0
    %2041 = vmatprep.subr.mxu0 0.0
    %2042 = vmatpush1.msra.mxu0 0.0
    %2043 = vmatprep.subr.mxu0 0.0
    %2044 = vmatpush1.msra.mxu0 0.0
    %2045 = vmatprep.subr.mxu0 0.0
    %2046 = vmatpush1.msra.mxu0 0.0
    %2047 = vmatprep.subr.mxu0 0.0
    %2048 = vmatpush1.msra.mxu0 0.0
    %2049 = vmatprep.subr.mxu0 0.0
    %2050 = vmatpush1.msra.mxu0 0.0
    %2051 = vmatprep.subr.mxu0 0.0
    %2052 = vmatpush1.msra.mxu0 0.0
    %2053 = vmatprep.subr.mxu0 0.0
    %2054 = vmatpush1.msra.mxu0 0.0
    %2055 = vmatprep.subr.mxu0 0.0
    %2056 = vmatpush1.msra.mxu0 0.0
    %2057 = vmatprep.subr.mxu0 0.0
    %2058 = vmatpush1.msra.mxu0 0.0
    %2059 = vmatprep.subr.mxu0 0.0
    %2060 = vmatpush1.msra.mxu0 0.0
    %2061 = vmatprep.mubr.f32.mxu0 0.0
    %2062 = vmatmul.mubr.f32.gmra.mrb[0].mxu0 %v1995
    %v2063 = vpop.f32.mrb[0].mxu0
    %v2064 = vadd.f32 0.0, %v2063
    %v2065 = vpop.f32.mrb[0].mxu0
    %2066 = vdwg.mxu0
    %v2067 = vadd.f32 %v1331, %v2064
    %v2068 = vxor.u32 %v2067, 2147483648
    %v2069 = vmul.f32 %v2068, 1.442695
    %v2070 = vpow.pop %v2069
    %v2071 = vadd.f32 %v2070, 1.0
    %v2072 = vrcp.pop %v2071
    %v2073 = vmul.f32 1.0, %v2072
    %v2074 = vadd.f32 %v2064, %v1562
    %2076 = vrot.lane.b32.xlu0 %v2074, 64
    %v2077 = vpop.permute.xlu0 %2076
    %v2079 = vmul.f32 %v2073, %v2077
    %2081 = vrot.lane.b32.xlu0 %v2079, 64
    %v2082 = vpop.permute.xlu0 %2081
    %v2084 = vadd.f32 %v1331, %v2082
    %v2085 = vtanh.pop %v2084
    %v2086 = vsub.f32 1.0, %v2073
    %2088 = vrot.lane.b32.xlu0 %v2085, 96
    %v2089 = vpop.permute.xlu0 %2088
    %v2091 = vmul.f32 %v2086, %v2089
    %v2092 = vmul.f32 %v2073, %v1991
    %v2093 = vadd.f32 %v2091, %v2092
    %2095 = vrot.lane.b32.xlu0 %v2093, 96
    %v2096 = vpop.permute.xlu0 %2095
    %v2097 = vsel %vm212, %v2096, 0
    %2099 = vmatprep.subr.mxu0 0.0
    %2100 = vmatpush1.msra.mxu0 %v1474
    %2101 = vmatprep.subr.mxu0 0.0
    %2102 = vmatpush1.msra.mxu0 %v1475
    %2103 = vmatprep.subr.mxu0 0.0
    %2104 = vmatpush1.msra.mxu0 %v1476
    %2105 = vmatprep.subr.mxu0 0.0
    %2106 = vmatpush1.msra.mxu0 %v1477
    %2107 = vmatprep.subr.mxu0 0.0
    %2108 = vmatpush1.msra.mxu0 0.0
    %2109 = vmatprep.subr.mxu0 0.0
    %2110 = vmatpush1.msra.mxu0 0.0
    %2111 = vmatprep.subr.mxu0 0.0
    %2112 = vmatpush1.msra.mxu0 0.0
    %2113 = vmatprep.subr.mxu0 0.0
    %2114 = vmatpush1.msra.mxu0 0.0
    %2115 = vmatprep.subr.mxu0 0.0
    %2116 = vmatpush1.msra.mxu0 0.0
    %2117 = vmatprep.subr.mxu0 0.0
    %2118 = vmatpush1.msra.mxu0 0.0
    %2119 = vmatprep.subr.mxu0 0.0
    %2120 = vmatpush1.msra.mxu0 0.0
    %2121 = vmatprep.subr.mxu0 0.0
    %2122 = vmatpush1.msra.mxu0 0.0
    %2123 = vmatprep.subr.mxu0 0.0
    %2124 = vmatpush1.msra.mxu0 0.0
    %2125 = vmatprep.subr.mxu0 0.0
    %2126 = vmatpush1.msra.mxu0 0.0
    %2127 = vmatprep.subr.mxu0 0.0
    %2128 = vmatpush1.msra.mxu0 0.0
    %2129 = vmatprep.subr.mxu0 0.0
    %2130 = vmatpush1.msra.mxu0 0.0
    %2131 = vmatprep.subr.mxu0 0.0
    %2132 = vmatpush1.msra.mxu0 0.0
    %2133 = vmatprep.subr.mxu0 0.0
    %2134 = vmatpush1.msra.mxu0 0.0
    %2135 = vmatprep.subr.mxu0 0.0
    %2136 = vmatpush1.msra.mxu0 0.0
    %2137 = vmatprep.subr.mxu0 0.0
    %2138 = vmatpush1.msra.mxu0 0.0
    %2139 = vmatprep.subr.mxu0 0.0
    %2140 = vmatpush1.msra.mxu0 0.0
    %2141 = vmatprep.subr.mxu0 0.0
    %2142 = vmatpush1.msra.mxu0 0.0
    %2143 = vmatprep.subr.mxu0 0.0
    %2144 = vmatpush1.msra.mxu0 0.0
    %2145 = vmatprep.subr.mxu0 0.0
    %2146 = vmatpush1.msra.mxu0 0.0
    %2147 = vmatprep.subr.mxu0 0.0
    %2148 = vmatpush1.msra.mxu0 0.0
    %2149 = vmatprep.subr.mxu0 0.0
    %2150 = vmatpush1.msra.mxu0 0.0
    %2151 = vmatprep.subr.mxu0 0.0
    %2152 = vmatpush1.msra.mxu0 0.0
    %2153 = vmatprep.subr.mxu0 0.0
    %2154 = vmatpush1.msra.mxu0 0.0
    %2155 = vmatprep.subr.mxu0 0.0
    %2156 = vmatpush1.msra.mxu0 0.0
    %2157 = vmatprep.subr.mxu0 0.0
    %2158 = vmatpush1.msra.mxu0 0.0
    %2159 = vmatprep.subr.mxu0 0.0
    %2160 = vmatpush1.msra.mxu0 0.0
    %2161 = vmatprep.subr.mxu0 0.0
    %2162 = vmatpush1.msra.mxu0 0.0
    %2163 = vmatprep.mubr.f32.mxu0 0.0
    %2164 = vmatmul.mubr.f32.gmra.mrb[0].mxu0 %v2097
    %v2165 = vpop.f32.mrb[0].mxu0
    %v2166 = vadd.f32 0.0, %v2165
    %v2167 = vpop.f32.mrb[0].mxu0
    %2168 = vdwg.mxu0
    %v2169 = vadd.f32 %v1400, %v2166
    %v2170 = vxor.u32 %v2169, 2147483648
    %v2171 = vmul.f32 %v2170, 1.442695
    %v2172 = vpow.pop %v2171
    %v2173 = vadd.f32 %v2172, 1.0
    %v2174 = vrcp.pop %v2173
    %v2175 = vmul.f32 1.0, %v2174
    %v2176 = vadd.f32 %v2166, %v1562
    %2178 = vrot.lane.b32.xlu0 %v2176, 64
    %v2179 = vpop.permute.xlu0 %2178
    %v2181 = vmul.f32 %v2175, %v2179
    %2183 = vrot.lane.b32.xlu0 %v2181, 64
    %v2184 = vpop.permute.xlu0 %2183
    %v2186 = vadd.f32 %v1400, %v2184
    %v2187 = vtanh.pop %v2186
    %v2188 = vsub.f32 1.0, %v2175
    %2190 = vrot.lane.b32.xlu0 %v2187, 96
    %v2191 = vpop.permute.xlu0 %2190
    %v2193 = vmul.f32 %v2188, %v2191
    %v2194 = vmul.f32 %v2175, %v2093
    %v2195 = vadd.f32 %v2193, %v2194
    %2197 = vrot.lane.b32.xlu0 %v2195, 96
    %v2198 = vpop.permute.xlu0 %2197
    %v2199 = vsel %vm212, %v2198, 0
    %2201 = vmatprep.subr.mxu0 0.0
    %2202 = vmatpush1.msra.mxu0 %v1474
    %2203 = vmatprep.subr.mxu0 0.0
    %2204 = vmatpush1.msra.mxu0 %v1475
    %2205 = vmatprep.subr.mxu0 0.0
    %2206 = vmatpush1.msra.mxu0 %v1476
    %2207 = vmatprep.subr.mxu0 0.0
    %2208 = vmatpush1.msra.mxu0 %v1477
    %2209 = vmatprep.subr.mxu0 0.0
    %2210 = vmatpush1.msra.mxu0 0.0
    %2211 = vmatprep.subr.mxu0 0.0
    %2212 = vmatpush1.msra.mxu0 0.0
    %2213 = vmatprep.subr.mxu0 0.0
    %2214 = vmatpush1.msra.mxu0 0.0
    %2215 = vmatprep.subr.mxu0 0.0
    %2216 = vmatpush1.msra.mxu0 0.0
    %2217 = vmatprep.subr.mxu0 0.0
    %2218 = vmatpush1.msra.mxu0 0.0
    %2219 = vmatprep.subr.mxu0 0.0
    %2220 = vmatpush1.msra.mxu0 0.0
    %2221 = vmatprep.subr.mxu0 0.0
    %2222 = vmatpush1.msra.mxu0 0.0
    %2223 = vmatprep.subr.mxu0 0.0
    %2224 = vmatpush1.msra.mxu0 0.0
    %2225 = vmatprep.subr.mxu0 0.0
    %2226 = vmatpush1.msra.mxu0 0.0
    %2227 = vmatprep.subr.mxu0 0.0
    %2228 = vmatpush1.msra.mxu0 0.0
    %2229 = vmatprep.subr.mxu0 0.0
    %2230 = vmatpush1.msra.mxu0 0.0
    %2231 = vmatprep.subr.mxu0 0.0
    %2232 = vmatpush1.msra.mxu0 0.0
    %2233 = vmatprep.subr.mxu0 0.0
    %2234 = vmatpush1.msra.mxu0 0.0
    %2235 = vmatprep.subr.mxu0 0.0
    %2236 = vmatpush1.msra.mxu0 0.0
    %2237 = vmatprep.subr.mxu0 0.0
    %2238 = vmatpush1.msra.mxu0 0.0
    %2239 = vmatprep.subr.mxu0 0.0
    %2240 = vmatpush1.msra.mxu0 0.0
    %2241 = vmatprep.subr.mxu0 0.0
    %2242 = vmatpush1.msra.mxu0 0.0
    %2243 = vmatprep.subr.mxu0 0.0
    %2244 = vmatpush1.msra.mxu0 0.0
    %2245 = vmatprep.subr.mxu0 0.0
    %2246 = vmatpush1.msra.mxu0 0.0
    %2247 = vmatprep.subr.mxu0 0.0
    %2248 = vmatpush1.msra.mxu0 0.0
    %2249 = vmatprep.subr.mxu0 0.0
    %2250 = vmatpush1.msra.mxu0 0.0
    %2251 = vmatprep.subr.mxu0 0.0
    %2252 = vmatpush1.msra.mxu0 0.0
    %2253 = vmatprep.subr.mxu0 0.0
    %2254 = vmatpush1.msra.mxu0 0.0
    %2255 = vmatprep.subr.mxu0 0.0
    %2256 = vmatpush1.msra.mxu0 0.0
    %2257 = vmatprep.subr.mxu0 0.0
    %2258 = vmatpush1.msra.mxu0 0.0
    %2259 = vmatprep.subr.mxu0 0.0
    %2260 = vmatpush1.msra.mxu0 0.0
    %2261 = vmatprep.subr.mxu0 0.0
    %2262 = vmatpush1.msra.mxu0 0.0
    %2263 = vmatprep.subr.mxu0 0.0
    %2264 = vmatpush1.msra.mxu0 0.0
    %2265 = vmatprep.mubr.f32.mxu0 0.0
    %2266 = vmatmul.mubr.f32.gmra.mrb[0].mxu0 %v2199
    %v2267 = vpop.f32.mrb[0].mxu0
    %v2268 = vadd.f32 0.0, %v2267
    %v2269 = vpop.f32.mrb[0].mxu0
    %2270 = vdwg.mxu0
    %v2271 = vadd.f32 %v1402, %v2268
    %v2272 = vxor.u32 %v2271, 2147483648
    %v2273 = vmul.f32 %v2272, 1.442695
    %v2274 = vpow.pop %v2273
    %v2275 = vadd.f32 %v2274, 1.0
    %v2276 = vrcp.pop %v2275
    %v2277 = vmul.f32 1.0, %v2276
    %v2278 = vadd.f32 %v2268, %v1562
    %2280 = vrot.lane.b32.xlu0 %v2278, 64
    %v2281 = vpop.permute.xlu0 %2280
    %v2283 = vmul.f32 %v2277, %v2281
    %2285 = vrot.lane.b32.xlu0 %v2283, 64
    %v2286 = vpop.permute.xlu0 %2285
    %v2288 = vadd.f32 %v1402, %v2286
    %v2289 = vtanh.pop %v2288
    %v2290 = vsub.f32 1.0, %v2277
    %2292 = vrot.lane.b32.xlu0 %v2289, 96
    %v2293 = vpop.permute.xlu0 %2292
    %v2295 = vmul.f32 %v2290, %v2293
    %v2296 = vmul.f32 %v2277, %v2195
    %v2297 = vadd.f32 %v2295, %v2296
    %v2298 = vld [vmem:[%s9] sm:$0xff]
    %v2299 = vld [vmem:[%s9 + $0x8] sm:$0xff]
    %v2300 = vld [vmem:[%s9 + $0x10] sm:$0xff]
    %v2301 = vld [vmem:[%s9 + $0x18] sm:$0xff]
    %v2302 = vld [vmem:[%s10] sm:$0x1]
    %v2304 = vlaneseq
    %v2305 = vshrl.u32 %v2304, 7
    %v2306 = vsub.s32 0, %v2305
    %v2307 = vrot.slane %v2302, %v2306
    %2310 = vrot.lane.b32.xlu0 %v2297, 96
    %v2311 = vpop.permute.xlu0 %2310
    %v2312 = vsel %vm212, %v2311, 0
    %2314 = vmatprep.subr.mxu0 0.0
    %2315 = vmatpush1.msra.mxu0 %v2298
    %2316 = vmatprep.subr.mxu0 0.0
    %2317 = vmatpush1.msra.mxu0 %v2299
    %2318 = vmatprep.subr.mxu0 0.0
    %2319 = vmatpush1.msra.mxu0 %v2300
    %2320 = vmatprep.subr.mxu0 0.0
    %2321 = vmatpush1.msra.mxu0 %v2301
    %2322 = vmatprep.subr.mxu0 0.0
    %2323 = vmatpush1.msra.mxu0 0.0
    %2324 = vmatprep.subr.mxu0 0.0
    %2325 = vmatpush1.msra.mxu0 0.0
    %2326 = vmatprep.subr.mxu0 0.0
    %2327 = vmatpush1.msra.mxu0 0.0
    %2328 = vmatprep.subr.mxu0 0.0
    %2329 = vmatpush1.msra.mxu0 0.0
    %2330 = vmatprep.subr.mxu0 0.0
    %2331 = vmatpush1.msra.mxu0 0.0
    %2332 = vmatprep.subr.mxu0 0.0
    %2333 = vmatpush1.msra.mxu0 0.0
    %2334 = vmatprep.subr.mxu0 0.0
    %2335 = vmatpush1.msra.mxu0 0.0
    %2336 = vmatprep.subr.mxu0 0.0
    %2337 = vmatpush1.msra.mxu0 0.0
    %2338 = vmatprep.subr.mxu0 0.0
    %2339 = vmatpush1.msra.mxu0 0.0
    %2340 = vmatprep.subr.mxu0 0.0
    %2341 = vmatpush1.msra.mxu0 0.0
    %2342 = vmatprep.subr.mxu0 0.0
    %2343 = vmatpush1.msra.mxu0 0.0
    %2344 = vmatprep.subr.mxu0 0.0
    %2345 = vmatpush1.msra.mxu0 0.0
    %2346 = vmatprep.subr.mxu0 0.0
    %2347 = vmatpush1.msra.mxu0 0.0
    %2348 = vmatprep.subr.mxu0 0.0
    %2349 = vmatpush1.msra.mxu0 0.0
    %2350 = vmatprep.subr.mxu0 0.0
    %2351 = vmatpush1.msra.mxu0 0.0
    %2352 = vmatprep.subr.mxu0 0.0
    %2353 = vmatpush1.msra.mxu0 0.0
    %2354 = vmatprep.subr.mxu0 0.0
    %2355 = vmatpush1.msra.mxu0 0.0
    %2356 = vmatprep.subr.mxu0 0.0
    %2357 = vmatpush1.msra.mxu0 0.0
    %2358 = vmatprep.subr.mxu0 0.0
    %2359 = vmatpush1.msra.mxu0 0.0
    %2360 = vmatprep.subr.mxu0 0.0
    %2361 = vmatpush1.msra.mxu0 0.0
    %2362 = vmatprep.subr.mxu0 0.0
    %2363 = vmatpush1.msra.mxu0 0.0
    %2364 = vmatprep.subr.mxu0 0.0
    %2365 = vmatpush1.msra.mxu0 0.0
    %2366 = vmatprep.subr.mxu0 0.0
    %2367 = vmatpush1.msra.mxu0 0.0
    %2368 = vmatprep.subr.mxu0 0.0
    %2369 = vmatpush1.msra.mxu0 0.0
    %2370 = vmatprep.subr.mxu0 0.0
    %2371 = vmatpush1.msra.mxu0 0.0
    %2372 = vmatprep.subr.mxu0 0.0
    %2373 = vmatpush1.msra.mxu0 0.0
    %2374 = vmatprep.subr.mxu0 0.0
    %2375 = vmatpush1.msra.mxu0 0.0
    %2376 = vmatprep.subr.mxu0 0.0
    %2377 = vmatpush1.msra.mxu0 0.0
    %2378 = vmatprep.mubr.f32.mxu0 0.0
    %2379 = vmatmul.mubr.f32.gmra.mrb[0].mxu0 %v2312
    %v2380 = vpop.f32.mrb[0].mxu0
    %v2381 = vadd.f32 %v2307, %v2380
    %v2382 = vpop.f32.mrb[0].mxu0
    %2383 = vdwg.mxu0
    %2385 = vrot.lane.b32.xlu0 %v1471, 32
    %v2386 = vpop.permute.xlu0 %2385
    %v2388 = vsel %vm212, %v2381, %v2386
    %vm2389 = vcmask 392192
    %2390 = vst.msk [vmem:[%s11] sm:$0xff] %vm2389, %v2388
    // Predicated region
    $region50: #{ae_forward.1} parent=1 // pred_check
      _
    $region51: #{ae_forward.1} parent=1 // pred_check_branch
      %2392 = sbr.rel (0) target = $region53
    $region52: #{ae_forward.1} parent=1 // pred_region
      _
    $region53: #{ae_forward.1} parent=1 // pred_fallthru
      _
    // Predicated region
    $region54: #{ae_forward.1} parent=1 // pred_check
      _
    $region55: #{ae_forward.1} parent=1 // pred_check_branch
      %2394 = sbr.rel (0) target = $region57
    $region56: #{ae_forward.1} parent=1 // pred_region
      _
    $region57: #{ae_forward.1} parent=1 // pred_fallthru
      _
    %2395 = vsyncpa [#allocation3], 1

</llo_original>
